<compile_context>
chip_gen: v6e
topology: v6e:2x2x1
jax: 0.10.0
libtpu: 0.0.40
codegen_flags: <defaults>
</compile_context>

<pallas_src>
import jax
import jax.numpy as jnp
import numpy as np
from jax.experimental import pallas as pl
from jax.experimental.pallas import tpu as pltpu

LANES = 128
DEFAULT_STRIP_ROWS = 512   # compute strip: bounds live intermediates to ~256 KiB
F32_TILE_ROWS = 2048       # 1 MiB / stream / buffer (fits v5e/v6e/v7x)
BF16_TILE_ROWS = 4096      # 1 MiB / stream / buffer


def _make_kernel(n_preds, rows, tile_rows, tiles_per_core, num_splits, strip,
                 acc_sublanes):
    n_q = 1 + 3 * n_preds          # [target_sum, (bce_sum, inter, pred_sum) * 7]
    n_strips = tile_rows // strip
    mask_possible = (num_splits * tiles_per_core * tile_rows) != rows

    def rowsum(x):
        # (strip, 128) f32 -> (acc_sublanes, 128); sublane-preserving when possible.
        if acc_sublanes == 8:
            return jnp.sum(x.reshape(strip // 8, 8, LANES), axis=0)
        return jnp.sum(x, axis=0, keepdims=True)

    def kernel(*refs):
        pred_refs = refs[:n_preds]          # each (tile_rows, 128)
        t_ref = refs[n_preds]               # (tile_rows, 128)
        out_ref = refs[n_preds + 1]         # (1, n_q) SMEM
        acc_ref = refs[n_preds + 2]         # (n_q, acc_sublanes, 128) VMEM f32

        c = pl.program_id(0)                # core split (parallel)
        k = pl.program_id(1)                # row-tile reduction (arbitrary)

        @pl.when(k == 0)
        def _init():
            acc_ref[...] = jnp.zeros_like(acc_ref)

        tile_row0 = (c * tiles_per_core + k) * tile_rows

        def do_strip(off, masked):
            t = t_ref[pl.ds(off, strip), :].astype(jnp.float32)
            if masked:
                row_ids = jax.lax.broadcasted_iota(jnp.int32, (strip, LANES), 0)
                valid = (row_ids + (tile_row0 + off)) < rows
                t = jnp.where(valid, t, 0.0)   # mask BEFORE any use (OOB garbage)
            t_pos = t > 0.5
            # target_sum partial: computed once per strip, shared by all heads.
            acc_ref[0] += rowsum(t)
            for i in range(n_preds):
                p = pred_refs[i][pl.ds(off, strip), :].astype(jnp.float32)
                if masked:
                    p = jnp.where(valid, p, 0.0)
                # Single-log BCE (binary targets); PyTorch BCELoss clamps log at
                # -100.  The minus sign is applied in the wrapper.
                sel = jnp.where(t_pos, p, 1.0 - p)
                acc_ref[1 + 3 * i] += rowsum(jnp.maximum(jnp.log(sel), -100.0))
                acc_ref[2 + 3 * i] += rowsum(p * t)
                acc_ref[3 + 3 * i] += rowsum(p)

        def do_tile(masked):
            if n_strips == 1:
                do_strip(0, masked)
            else:
                def body(s, carry):
                    do_strip(pl.multiple_of(s * strip, strip), masked)
                    return carry
                jax.lax.fori_loop(0, n_strips, body, 0)

        if mask_possible:
            # Only tiles sticking out past `rows` pay for the mask work.
            in_range = tile_row0 + tile_rows <= rows

            @pl.when(in_range)
            def _full():
                do_tile(False)

            @pl.when(jnp.logical_not(in_range))
            def _ragged():
                do_tile(True)
        else:
            do_tile(False)

        @pl.when(k == tiles_per_core - 1)
        def _finalize():
            # Cross-lane/sublane reduce only once, at the end, per core.
            for q in range(n_q):
                out_ref[0, q] = jnp.sum(acc_ref[q])

    return kernel


def u2net_loss(preds, target, smooth=1.0, max_tile_rows=None,
               strip_rows=DEFAULT_STRIP_ROWS):
    """preds: list/tuple of 7 side outputs (post-sigmoid), each shaped like target."""
    preds = list(preds)
    n_preds = len(preds)
    total = int(np.prod(target.shape))
    rows = pl.cdiv(total, LANES)
    lane_pad = rows * LANES - total
    n_q = 1 + 3 * n_preds

    itemsize = max(x.dtype.itemsize for x in preds + [target])
    if max_tile_rows is None:
        max_tile_rows = F32_TILE_ROWS if itemsize >= 4 else BF16_TILE_ROWS

    if rows <= max_tile_rows:
        tile_rows = rows               # single tile: full-extent block allowed
    else:
        tile_rows = max_tile_rows      # multiple of 8 (and of strip_rows)

    n_tiles = pl.cdiv(rows, tile_rows)
    num_splits = 2 if n_tiles >= 2 else 1        # v7x: shard across both TCs
    tiles_per_core = pl.cdiv(n_tiles, num_splits)

    if tile_rows % strip_rows == 0 and tile_rows > strip_rows:
        strip = strip_rows
    else:
        strip = tile_rows
    acc_sublanes = 8 if strip % 8 == 0 else 1

    def prep(x):
        # Keep native dtype (bf16 stays bf16 -> half HBM traffic); cast in-kernel.
        xf = jnp.reshape(x, (-1,))
        if lane_pad:
            # TODO(synk): rare path (numel % 128 != 0) pays one pad copy per
            # stream; acceptable since U2Net shapes are lane-aligned in practice.
            xf = jnp.pad(xf, (0, lane_pad))
        return jnp.reshape(xf, (rows, LANES))

    def in_idx(c, k):
        # Clamp so dummy trailing tiles of the padded split grid stay in-bounds;
        # their contribution is fully masked to zero in-kernel.
        return (jnp.minimum(c * tiles_per_core + k, n_tiles - 1), 0)

    block = pl.BlockSpec((tile_rows, LANES), in_idx)

    tile_bytes = tile_rows * LANES * itemsize
    acc_bytes = n_q * 8 * LANES * 4
    vmem_limit = int((n_preds + 1) * 2 * tile_bytes + acc_bytes + (16 << 20))

    sums = pl.pallas_call(
        _make_kernel(n_preds, rows, tile_rows, tiles_per_core, num_splits,
                     strip, acc_sublanes),
        out_shape=jax.ShapeDtypeStruct((num_splits, n_q), jnp.float32),
        grid_spec=pltpu.PrefetchScalarGridSpec(
            num_scalar_prefetch=0,
            grid=(num_splits, tiles_per_core),
            in_specs=[block] * (n_preds + 1),
            out_specs=pl.BlockSpec((1, n_q), lambda c, k: (c, 0),
                                   memory_space=pltpu.SMEM),
            scratch_shapes=[pltpu.VMEM((n_q, acc_sublanes, LANES), jnp.float32)],
        ),
        compiler_params=pltpu.CompilerParams(
            dimension_semantics=("parallel", "arbitrary"),
            vmem_limit_bytes=vmem_limit),
    )(*[prep(p) for p in preds], prep(target))

    sums = jnp.sum(sums, axis=0)               # combine the per-core partials
    tsum = sums[0]
    bce = -sums[1::3] / float(total)            # mean BCE per head (sign here)
    inter = sums[2::3]
    psum = sums[3::3]
    dice = 1.0 - (2.0 * inter + smooth) / (psum + tsum + smooth)
    loss = bce + dice                            # loss_i = bce_i + dice_i
    # total = loss0 + 0.5 * (loss1 + ... + loss6)
    return loss[0] + 0.5 * jnp.sum(loss[1:])


def _reference_loss(preds, target, smooth=1.0):
    """Pure-JAX reference mirroring nn.BCELoss(mean) + global soft-Dice."""
    t = target.astype(jnp.float32)
    losses = []
    for p in preds:
        p = p.astype(jnp.float32)
        log_p = jnp.maximum(jnp.log(p), -100.0)
        log_1mp = jnp.maximum(jnp.log(1.0 - p), -100.0)
        bce = -jnp.mean(t * log_p + (1.0 - t) * log_1mp)
        inter = jnp.sum(p * t)
        dice = 1.0 - (2.0 * inter + smooth) / (jnp.sum(p) + jnp.sum(t) + smooth)
        losses.append(bce + dice)
    return losses[0] + 0.5 * sum(losses[1:])


if __name__ == "__main__":
    key = jax.random.PRNGKey(0)

    def run_case(shape, **kw):
        ks = jax.random.split(key, 8)
        # 7 side outputs, already sigmoid-activated (BCELoss expects probabilities).
        preds = [jax.nn.sigmoid(jax.random.normal(ks[i], shape, jnp.float32))
                 for i in range(7)]
        # Binary target mask.
        target = (jax.random.uniform(ks[7], shape) > 0.5).astype(jnp.float32)
        out = jax.block_until_ready(u2net_loss(preds, target, **kw))
        ref = jax.block_until_ready(_reference_loss(preds, target))
        np.testing.assert_allclose(np.asarray(out), np.asarray(ref),
                                   rtol=1e-5, atol=1e-5)

    # Single small tile (rows < 8): full-extent block, (1,128) accumulator path.
    run_case((2, 1, 16, 16))
    # Single tile, rows multiple of 8: (8,128) sublane-preserving accumulator.
    run_case((2, 4, 16, 16))
    # Multi-tile: 2-way core split, ragged last tile (runtime-gated mask),
    # dummy clamped tile, and the in-tile strip loop (rows=120, tiles=48, strips=16).
    run_case((2, 3, 40, 64), max_tile_rows=48, strip_rows=16)
    # numel not a multiple of 128 (lane-pad fallback).
    run_case((1, 1, 15, 30))

    print("KERNEL_OK")
</pallas_src>

<mosaic_0001>
module attributes {stable_mosaic.version = 11 : i64} {
  func.func @kernel(%arg0: i32, %arg1: i32, %arg2: memref<4x128xf32, #tpu.memory_space<vmem>>, %arg3: memref<4x128xf32, #tpu.memory_space<vmem>>, %arg4: memref<4x128xf32, #tpu.memory_space<vmem>>, %arg5: memref<4x128xf32, #tpu.memory_space<vmem>>, %arg6: memref<4x128xf32, #tpu.memory_space<vmem>>, %arg7: memref<4x128xf32, #tpu.memory_space<vmem>>, %arg8: memref<4x128xf32, #tpu.memory_space<vmem>>, %arg9: memref<4x128xf32, #tpu.memory_space<vmem>>, %arg10: memref<1x22xf32, #tpu.memory_space<smem>>, %arg11: memref<22x1x128xf32, #tpu.memory_space<vmem>>) attributes {dimension_semantics = [#tpu.dimension_semantics<parallel>, #tpu.dimension_semantics<arbitrary>], iteration_bounds = array<i64: 1, 1>, scalar_prefetch = 0 : i64, scratch_operands = 1 : i64, tpu.core_type = #tpu.core_type<tc>, window_params = [{transform_indices = @transform_0, window_bounds = array<i64: 4, 128>}, {transform_indices = @transform_1, window_bounds = array<i64: 4, 128>}, {transform_indices = @transform_2, window_bounds = array<i64: 4, 128>}, {transform_indices = @transform_3, window_bounds = array<i64: 4, 128>}, {transform_indices = @transform_4, window_bounds = array<i64: 4, 128>}, {transform_indices = @transform_5, window_bounds = array<i64: 4, 128>}, {transform_indices = @transform_6, window_bounds = array<i64: 4, 128>}, {transform_indices = @transform_7, window_bounds = array<i64: 4, 128>}, {transform_indices = @transform_8, window_bounds = array<i64: 1, 22>}]} {
    %c0_i32 = arith.constant 0 : i32
    %0 = arith.cmpi eq, %arg1, %c0_i32 : i32
    %1 = arith.extui %0 : i1 to i32
    %c0_i32_0 = arith.constant 0 : i32
    %2 = arith.cmpi ne, %1, %c0_i32_0 : i32
    scf.if %2 {
      %cst_165 = arith.constant 0.000000e+00 : f32
      %241 = vector.broadcast %cst_165 : f32 to vector<22x1x128xf32>
      %c0_166 = arith.constant 0 : index
      %c0_167 = arith.constant 0 : index
      %c0_168 = arith.constant 0 : index
      %242 = vector.load %arg11[%c0_166, %c0_167, %c0_168] : memref<22x1x128xf32, #tpu.memory_space<vmem>>, vector<22x1x128xf32>
      tpu.vector_store %arg11[%c0_166, %c0_167, %c0_168], %241 {strides = array<i32>} : memref<22x1x128xf32, #tpu.memory_space<vmem>>, vector<22x1x128xf32>,
    } else {
    }
    %c0 = arith.constant 0 : index
    %c0_1 = arith.constant 0 : index
    %3 = vector.load %arg9[%c0, %c0_1] : memref<4x128xf32, #tpu.memory_space<vmem>>, vector<4x128xf32>
    %cst = arith.constant 5.000000e-01 : f32
    %4 = vector.broadcast %cst : f32 to vector<4x128xf32>
    %5 = arith.cmpf ogt, %3, %4 : vector<4x128xf32>
    %c0_2 = arith.constant 0 : index
    %c0_3 = arith.constant 0 : index
    %c0_4 = arith.constant 0 : index
    %6 = vector.load %arg11[%c0_2, %c0_3, %c0_4] : memref<22x1x128xf32, #tpu.memory_space<vmem>>, vector<1x1x128xf32>
    %7 = vector.shape_cast %6 : vector<1x1x128xf32> to vector<1x128xf32>
    %cst_5 = arith.constant dense<0.000000e+00> : vector<128xf32>
    %8 = vector.multi_reduction <add>, %3, %cst_5 [0] : vector<4x128xf32> to vector<128xf32>
    %9 = vector.shape_cast %8 : vector<128xf32> to vector<1x128xf32>
    %10 = arith.addf %7, %9 : vector<1x128xf32>
    %c0_6 = arith.constant 0 : index
    %c0_7 = arith.constant 0 : index
    %c0_8 = arith.constant 0 : index
    %11 = vector.load %arg11[%c0_6, %c0_7, %c0_8] : memref<22x1x128xf32, #tpu.memory_space<vmem>>, vector<1x1x128xf32>
    %12 = vector.shape_cast %11 : vector<1x1x128xf32> to vector<1x128xf32>
    %13 = vector.shape_cast %10 : vector<1x128xf32> to vector<1x1x128xf32>
    tpu.vector_store %arg11[%c0_6, %c0_7, %c0_8], %13 {strides = array<i32>} : memref<22x1x128xf32, #tpu.memory_space<vmem>>, vector<1x1x128xf32>,
    %c0_9 = arith.constant 0 : index
    %c0_10 = arith.constant 0 : index
    %14 = vector.load %arg2[%c0_9, %c0_10] : memref<4x128xf32, #tpu.memory_space<vmem>>, vector<4x128xf32>
    %cst_11 = arith.constant 1.000000e+00 : f32
    %15 = vector.broadcast %cst_11 : f32 to vector<4x128xf32>
    %16 = arith.subf %15, %14 : vector<4x128xf32>
    %17 = arith.select %5, %14, %16 : vector<4x128xi1>, vector<4x128xf32>
    %c1 = arith.constant 1 : index
    %c0_12 = arith.constant 0 : index
    %c0_13 = arith.constant 0 : index
    %18 = vector.load %arg11[%c1, %c0_12, %c0_13] : memref<22x1x128xf32, #tpu.memory_space<vmem>>, vector<1x1x128xf32>
    %19 = vector.shape_cast %18 : vector<1x1x128xf32> to vector<1x128xf32>
    %20 = math.log %17 : vector<4x128xf32>
    %cst_14 = arith.constant -1.000000e+02 : f32
    %21 = vector.broadcast %cst_14 : f32 to vector<4x128xf32>
    %22 = arith.maximumf %20, %21 : vector<4x128xf32>
    %cst_15 = arith.constant dense<0.000000e+00> : vector<128xf32>
    %23 = vector.multi_reduction <add>, %22, %cst_15 [0] : vector<4x128xf32> to vector<128xf32>
    %24 = vector.shape_cast %23 : vector<128xf32> to vector<1x128xf32>
    %25 = arith.addf %19, %24 : vector<1x128xf32>
    %c1_16 = arith.constant 1 : index
    %c0_17 = arith.constant 0 : index
    %c0_18 = arith.constant 0 : index
    %26 = vector.load %arg11[%c1_16, %c0_17, %c0_18] : memref<22x1x128xf32, #tpu.memory_space<vmem>>, vector<1x1x128xf32>
    %27 = vector.shape_cast %26 : vector<1x1x128xf32> to vector<1x128xf32>
    %28 = vector.shape_cast %25 : vector<1x128xf32> to vector<1x1x128xf32>
    tpu.vector_store %arg11[%c1_16, %c0_17, %c0_18], %28 {strides = array<i32>} : memref<22x1x128xf32, #tpu.memory_space<vmem>>, vector<1x1x128xf32>,
    %c2 = arith.constant 2 : index
    %c0_19 = arith.constant 0 : index
    %c0_20 = arith.constant 0 : index
    %29 = vector.load %arg11[%c2, %c0_19, %c0_20] : memref<22x1x128xf32, #tpu.memory_space<vmem>>, vector<1x1x128xf32>
    %30 = vector.shape_cast %29 : vector<1x1x128xf32> to vector<1x128xf32>
    %31 = arith.mulf %14, %3 : vector<4x128xf32>
    %cst_21 = arith.constant dense<0.000000e+00> : vector<128xf32>
    %32 = vector.multi_reduction <add>, %31, %cst_21 [0] : vector<4x128xf32> to vector<128xf32>
    %33 = vector.shape_cast %32 : vector<128xf32> to vector<1x128xf32>
    %34 = arith.addf %30, %33 : vector<1x128xf32>
    %c2_22 = arith.constant 2 : index
    %c0_23 = arith.constant 0 : index
    %c0_24 = arith.constant 0 : index
    %35 = vector.load %arg11[%c2_22, %c0_23, %c0_24] : memref<22x1x128xf32, #tpu.memory_space<vmem>>, vector<1x1x128xf32>
    %36 = vector.shape_cast %35 : vector<1x1x128xf32> to vector<1x128xf32>
    %37 = vector.shape_cast %34 : vector<1x128xf32> to vector<1x1x128xf32>
    tpu.vector_store %arg11[%c2_22, %c0_23, %c0_24], %37 {strides = array<i32>} : memref<22x1x128xf32, #tpu.memory_space<vmem>>, vector<1x1x128xf32>,
    %c3 = arith.constant 3 : index
    %c0_25 = arith.constant 0 : index
    %c0_26 = arith.constant 0 : index
    %38 = vector.load %arg11[%c3, %c0_25, %c0_26] : memref<22x1x128xf32, #tpu.memory_space<vmem>>, vector<1x1x128xf32>
    %39 = vector.shape_cast %38 : vector<1x1x128xf32> to vector<1x128xf32>
    %cst_27 = arith.constant dense<0.000000e+00> : vector<128xf32>
    %40 = vector.multi_reduction <add>, %14, %cst_27 [0] : vector<4x128xf32> to vector<128xf32>
    %41 = vector.shape_cast %40 : vector<128xf32> to vector<1x128xf32>
    %42 = arith.addf %39, %41 : vector<1x128xf32>
    %c3_28 = arith.constant 3 : index
    %c0_29 = arith.constant 0 : index
    %c0_30 = arith.constant 0 : index
    %43 = vector.load %arg11[%c3_28, %c0_29, %c0_30] : memref<22x1x128xf32, #tpu.memory_space<vmem>>, vector<1x1x128xf32>
    %44 = vector.shape_cast %43 : vector<1x1x128xf32> to vector<1x128xf32>
    %45 = vector.shape_cast %42 : vector<1x128xf32> to vector<1x1x128xf32>
    tpu.vector_store %arg11[%c3_28, %c0_29, %c0_30], %45 {strides = array<i32>} : memref<22x1x128xf32, #tpu.memory_space<vmem>>, vector<1x1x128xf32>,
    %c0_31 = arith.constant 0 : index
    %c0_32 = arith.constant 0 : index
    %46 = vector.load %arg3[%c0_31, %c0_32] : memref<4x128xf32, #tpu.memory_space<vmem>>, vector<4x128xf32>
    %cst_33 = arith.constant 1.000000e+00 : f32
    %47 = vector.broadcast %cst_33 : f32 to vector<4x128xf32>
    %48 = arith.subf %47, %46 : vector<4x128xf32>
    %49 = arith.select %5, %46, %48 : vector<4x128xi1>, vector<4x128xf32>
    %c4 = arith.constant 4 : index
    %c0_34 = arith.constant 0 : index
    %c0_35 = arith.constant 0 : index
    %50 = vector.load %arg11[%c4, %c0_34, %c0_35] : memref<22x1x128xf32, #tpu.memory_space<vmem>>, vector<1x1x128xf32>
    %51 = vector.shape_cast %50 : vector<1x1x128xf32> to vector<1x128xf32>
    %52 = math.log %49 : vector<4x128xf32>
    %cst_36 = arith.constant -1.000000e+02 : f32
    %53 = vector.broadcast %cst_36 : f32 to vector<4x128xf32>
    %54 = arith.maximumf %52, %53 : vector<4x128xf32>
    %cst_37 = arith.constant dense<0.000000e+00> : vector<128xf32>
    %55 = vector.multi_reduction <add>, %54, %cst_37 [0] : vector<4x128xf32> to vector<128xf32>
    %56 = vector.shape_cast %55 : vector<128xf32> to vector<1x128xf32>
    %57 = arith.addf %51, %56 : vector<1x128xf32>
    %c4_38 = arith.constant 4 : index
    %c0_39 = arith.constant 0 : index
    %c0_40 = arith.constant 0 : index
    %58 = vector.load %arg11[%c4_38, %c0_39, %c0_40] : memref<22x1x128xf32, #tpu.memory_space<vmem>>, vector<1x1x128xf32>
    %59 = vector.shape_cast %58 : vector<1x1x128xf32> to vector<1x128xf32>
    %60 = vector.shape_cast %57 : vector<1x128xf32> to vector<1x1x128xf32>
    tpu.vector_store %arg11[%c4_38, %c0_39, %c0_40], %60 {strides = array<i32>} : memref<22x1x128xf32, #tpu.memory_space<vmem>>, vector<1x1x128xf32>,
    %c5 = arith.constant 5 : index
    %c0_41 = arith.constant 0 : index
    %c0_42 = arith.constant 0 : index
    %61 = vector.load %arg11[%c5, %c0_41, %c0_42] : memref<22x1x128xf32, #tpu.memory_space<vmem>>, vector<1x1x128xf32>
    %62 = vector.shape_cast %61 : vector<1x1x128xf32> to vector<1x128xf32>
    %63 = arith.mulf %46, %3 : vector<4x128xf32>
    %cst_43 = arith.constant dense<0.000000e+00> : vector<128xf32>
    %64 = vector.multi_reduction <add>, %63, %cst_43 [0] : vector<4x128xf32> to vector<128xf32>
    %65 = vector.shape_cast %64 : vector<128xf32> to vector<1x128xf32>
    %66 = arith.addf %62, %65 : vector<1x128xf32>
    %c5_44 = arith.constant 5 : index
    %c0_45 = arith.constant 0 : index
    %c0_46 = arith.constant 0 : index
    %67 = vector.load %arg11[%c5_44, %c0_45, %c0_46] : memref<22x1x128xf32, #tpu.memory_space<vmem>>, vector<1x1x128xf32>
    %68 = vector.shape_cast %67 : vector<1x1x128xf32> to vector<1x128xf32>
    %69 = vector.shape_cast %66 : vector<1x128xf32> to vector<1x1x128xf32>
    tpu.vector_store %arg11[%c5_44, %c0_45, %c0_46], %69 {strides = array<i32>} : memref<22x1x128xf32, #tpu.memory_space<vmem>>, vector<1x1x128xf32>,
    %c6 = arith.constant 6 : index
    %c0_47 = arith.constant 0 : index
    %c0_48 = arith.constant 0 : index
    %70 = vector.load %arg11[%c6, %c0_47, %c0_48] : memref<22x1x128xf32, #tpu.memory_space<vmem>>, vector<1x1x128xf32>
    %71 = vector.shape_cast %70 : vector<1x1x128xf32> to vector<1x128xf32>
    %cst_49 = arith.constant dense<0.000000e+00> : vector<128xf32>
    %72 = vector.multi_reduction <add>, %46, %cst_49 [0] : vector<4x128xf32> to vector<128xf32>
    %73 = vector.shape_cast %72 : vector<128xf32> to vector<1x128xf32>
    %74 = arith.addf %71, %73 : vector<1x128xf32>
    %c6_50 = arith.constant 6 : index
    %c0_51 = arith.constant 0 : index
    %c0_52 = arith.constant 0 : index
    %75 = vector.load %arg11[%c6_50, %c0_51, %c0_52] : memref<22x1x128xf32, #tpu.memory_space<vmem>>, vector<1x1x128xf32>
    %76 = vector.shape_cast %75 : vector<1x1x128xf32> to vector<1x128xf32>
    %77 = vector.shape_cast %74 : vector<1x128xf32> to vector<1x1x128xf32>
    tpu.vector_store %arg11[%c6_50, %c0_51, %c0_52], %77 {strides = array<i32>} : memref<22x1x128xf32, #tpu.memory_space<vmem>>, vector<1x1x128xf32>,
    %c0_53 = arith.constant 0 : index
    %c0_54 = arith.constant 0 : index
    %78 = vector.load %arg4[%c0_53, %c0_54] : memref<4x128xf32, #tpu.memory_space<vmem>>, vector<4x128xf32>
    %cst_55 = arith.constant 1.000000e+00 : f32
    %79 = vector.broadcast %cst_55 : f32 to vector<4x128xf32>
    %80 = arith.subf %79, %78 : vector<4x128xf32>
    %81 = arith.select %5, %78, %80 : vector<4x128xi1>, vector<4x128xf32>
    %c7 = arith.constant 7 : index
    %c0_56 = arith.constant 0 : index
    %c0_57 = arith.constant 0 : index
    %82 = vector.load %arg11[%c7, %c0_56, %c0_57] : memref<22x1x128xf32, #tpu.memory_space<vmem>>, vector<1x1x128xf32>
    %83 = vector.shape_cast %82 : vector<1x1x128xf32> to vector<1x128xf32>
    %84 = math.log %81 : vector<4x128xf32>
    %cst_58 = arith.constant -1.000000e+02 : f32
    %85 = vector.broadcast %cst_58 : f32 to vector<4x128xf32>
    %86 = arith.maximumf %84, %85 : vector<4x128xf32>
    %cst_59 = arith.constant dense<0.000000e+00> : vector<128xf32>
    %87 = vector.multi_reduction <add>, %86, %cst_59 [0] : vector<4x128xf32> to vector<128xf32>
    %88 = vector.shape_cast %87 : vector<128xf32> to vector<1x128xf32>
    %89 = arith.addf %83, %88 : vector<1x128xf32>
    %c7_60 = arith.constant 7 : index
    %c0_61 = arith.constant 0 : index
    %c0_62 = arith.constant 0 : index
    %90 = vector.load %arg11[%c7_60, %c0_61, %c0_62] : memref<22x1x128xf32, #tpu.memory_space<vmem>>, vector<1x1x128xf32>
    %91 = vector.shape_cast %90 : vector<1x1x128xf32> to vector<1x128xf32>
    %92 = vector.shape_cast %89 : vector<1x128xf32> to vector<1x1x128xf32>
    tpu.vector_store %arg11[%c7_60, %c0_61, %c0_62], %92 {strides = array<i32>} : memref<22x1x128xf32, #tpu.memory_space<vmem>>, vector<1x1x128xf32>,
    %c8 = arith.constant 8 : index
    %c0_63 = arith.constant 0 : index
    %c0_64 = arith.constant 0 : index
    %93 = vector.load %arg11[%c8, %c0_63, %c0_64] : memref<22x1x128xf32, #tpu.memory_space<vmem>>, vector<1x1x128xf32>
    %94 = vector.shape_cast %93 : vector<1x1x128xf32> to vector<1x128xf32>
    %95 = arith.mulf %78, %3 : vector<4x128xf32>
    %cst_65 = arith.constant dense<0.000000e+00> : vector<128xf32>
    %96 = vector.multi_reduction <add>, %95, %cst_65 [0] : vector<4x128xf32> to vector<128xf32>
    %97 = vector.shape_cast %96 : vector<128xf32> to vector<1x128xf32>
    %98 = arith.addf %94, %97 : vector<1x128xf32>
    %c8_66 = arith.constant 8 : index
    %c0_67 = arith.constant 0 : index
    %c0_68 = arith.constant 0 : index
    %99 = vector.load %arg11[%c8_66, %c0_67, %c0_68] : memref<22x1x128xf32, #tpu.memory_space<vmem>>, vector<1x1x128xf32>
    %100 = vector.shape_cast %99 : vector<1x1x128xf32> to vector<1x128xf32>
    %101 = vector.shape_cast %98 : vector<1x128xf32> to vector<1x1x128xf32>
    tpu.vector_store %arg11[%c8_66, %c0_67, %c0_68], %101 {strides = array<i32>} : memref<22x1x128xf32, #tpu.memory_space<vmem>>, vector<1x1x128xf32>,
    %c9 = arith.constant 9 : index
    %c0_69 = arith.constant 0 : index
    %c0_70 = arith.constant 0 : index
    %102 = vector.load %arg11[%c9, %c0_69, %c0_70] : memref<22x1x128xf32, #tpu.memory_space<vmem>>, vector<1x1x128xf32>
    %103 = vector.shape_cast %102 : vector<1x1x128xf32> to vector<1x128xf32>
    %cst_71 = arith.constant dense<0.000000e+00> : vector<128xf32>
    %104 = vector.multi_reduction <add>, %78, %cst_71 [0] : vector<4x128xf32> to vector<128xf32>
    %105 = vector.shape_cast %104 : vector<128xf32> to vector<1x128xf32>
    %106 = arith.addf %103, %105 : vector<1x128xf32>
    %c9_72 = arith.constant 9 : index
    %c0_73 = arith.constant 0 : index
    %c0_74 = arith.constant 0 : index
    %107 = vector.load %arg11[%c9_72, %c0_73, %c0_74] : memref<22x1x128xf32, #tpu.memory_space<vmem>>, vector<1x1x128xf32>
    %108 = vector.shape_cast %107 : vector<1x1x128xf32> to vector<1x128xf32>
    %109 = vector.shape_cast %106 : vector<1x128xf32> to vector<1x1x128xf32>
    tpu.vector_store %arg11[%c9_72, %c0_73, %c0_74], %109 {strides = array<i32>} : memref<22x1x128xf32, #tpu.memory_space<vmem>>, vector<1x1x128xf32>,
    %c0_75 = arith.constant 0 : index
    %c0_76 = arith.constant 0 : index
    %110 = vector.load %arg5[%c0_75, %c0_76] : memref<4x128xf32, #tpu.memory_space<vmem>>, vector<4x128xf32>
    %cst_77 = arith.constant 1.000000e+00 : f32
    %111 = vector.broadcast %cst_77 : f32 to vector<4x128xf32>
    %112 = arith.subf %111, %110 : vector<4x128xf32>
    %113 = arith.select %5, %110, %112 : vector<4x128xi1>, vector<4x128xf32>
    %c10 = arith.constant 10 : index
    %c0_78 = arith.constant 0 : index
    %c0_79 = arith.constant 0 : index
    %114 = vector.load %arg11[%c10, %c0_78, %c0_79] : memref<22x1x128xf32, #tpu.memory_space<vmem>>, vector<1x1x128xf32>
    %115 = vector.shape_cast %114 : vector<1x1x128xf32> to vector<1x128xf32>
    %116 = math.log %113 : vector<4x128xf32>
    %cst_80 = arith.constant -1.000000e+02 : f32
    %117 = vector.broadcast %cst_80 : f32 to vector<4x128xf32>
    %118 = arith.maximumf %116, %117 : vector<4x128xf32>
    %cst_81 = arith.constant dense<0.000000e+00> : vector<128xf32>
    %119 = vector.multi_reduction <add>, %118, %cst_81 [0] : vector<4x128xf32> to vector<128xf32>
    %120 = vector.shape_cast %119 : vector<128xf32> to vector<1x128xf32>
    %121 = arith.addf %115, %120 : vector<1x128xf32>
    %c10_82 = arith.constant 10 : index
    %c0_83 = arith.constant 0 : index
    %c0_84 = arith.constant 0 : index
    %122 = vector.load %arg11[%c10_82, %c0_83, %c0_84] : memref<22x1x128xf32, #tpu.memory_space<vmem>>, vector<1x1x128xf32>
    %123 = vector.shape_cast %122 : vector<1x1x128xf32> to vector<1x128xf32>
    %124 = vector.shape_cast %121 : vector<1x128xf32> to vector<1x1x128xf32>
    tpu.vector_store %arg11[%c10_82, %c0_83, %c0_84], %124 {strides = array<i32>} : memref<22x1x128xf32, #tpu.memory_space<vmem>>, vector<1x1x128xf32>,
    %c11 = arith.constant 11 : index
    %c0_85 = arith.constant 0 : index
    %c0_86 = arith.constant 0 : index
    %125 = vector.load %arg11[%c11, %c0_85, %c0_86] : memref<22x1x128xf32, #tpu.memory_space<vmem>>, vector<1x1x128xf32>
    %126 = vector.shape_cast %125 : vector<1x1x128xf32> to vector<1x128xf32>
    %127 = arith.mulf %110, %3 : vector<4x128xf32>
    %cst_87 = arith.constant dense<0.000000e+00> : vector<128xf32>
    %128 = vector.multi_reduction <add>, %127, %cst_87 [0] : vector<4x128xf32> to vector<128xf32>
    %129 = vector.shape_cast %128 : vector<128xf32> to vector<1x128xf32>
    %130 = arith.addf %126, %129 : vector<1x128xf32>
    %c11_88 = arith.constant 11 : index
    %c0_89 = arith.constant 0 : index
    %c0_90 = arith.constant 0 : index
    %131 = vector.load %arg11[%c11_88, %c0_89, %c0_90] : memref<22x1x128xf32, #tpu.memory_space<vmem>>, vector<1x1x128xf32>
    %132 = vector.shape_cast %131 : vector<1x1x128xf32> to vector<1x128xf32>
    %133 = vector.shape_cast %130 : vector<1x128xf32> to vector<1x1x128xf32>
    tpu.vector_store %arg11[%c11_88, %c0_89, %c0_90], %133 {strides = array<i32>} : memref<22x1x128xf32, #tpu.memory_space<vmem>>, vector<1x1x128xf32>,
    %c12 = arith.constant 12 : index
    %c0_91 = arith.constant 0 : index
    %c0_92 = arith.constant 0 : index
    %134 = vector.load %arg11[%c12, %c0_91, %c0_92] : memref<22x1x128xf32, #tpu.memory_space<vmem>>, vector<1x1x128xf32>
    %135 = vector.shape_cast %134 : vector<1x1x128xf32> to vector<1x128xf32>
    %cst_93 = arith.constant dense<0.000000e+00> : vector<128xf32>
    %136 = vector.multi_reduction <add>, %110, %cst_93 [0] : vector<4x128xf32> to vector<128xf32>
    %137 = vector.shape_cast %136 : vector<128xf32> to vector<1x128xf32>
    %138 = arith.addf %135, %137 : vector<1x128xf32>
    %c12_94 = arith.constant 12 : index
    %c0_95 = arith.constant 0 : index
    %c0_96 = arith.constant 0 : index
    %139 = vector.load %arg11[%c12_94, %c0_95, %c0_96] : memref<22x1x128xf32, #tpu.memory_space<vmem>>, vector<1x1x128xf32>
    %140 = vector.shape_cast %139 : vector<1x1x128xf32> to vector<1x128xf32>
    %141 = vector.shape_cast %138 : vector<1x128xf32> to vector<1x1x128xf32>
    tpu.vector_store %arg11[%c12_94, %c0_95, %c0_96], %141 {strides = array<i32>} : memref<22x1x128xf32, #tpu.memory_space<vmem>>, vector<1x1x128xf32>,
    %c0_97 = arith.constant 0 : index
    %c0_98 = arith.constant 0 : index
    %142 = vector.load %arg6[%c0_97, %c0_98] : memref<4x128xf32, #tpu.memory_space<vmem>>, vector<4x128xf32>
    %cst_99 = arith.constant 1.000000e+00 : f32
    %143 = vector.broadcast %cst_99 : f32 to vector<4x128xf32>
    %144 = arith.subf %143, %142 : vector<4x128xf32>
    %145 = arith.select %5, %142, %144 : vector<4x128xi1>, vector<4x128xf32>
    %c13 = arith.constant 13 : index
    %c0_100 = arith.constant 0 : index
    %c0_101 = arith.constant 0 : index
    %146 = vector.load %arg11[%c13, %c0_100, %c0_101] : memref<22x1x128xf32, #tpu.memory_space<vmem>>, vector<1x1x128xf32>
    %147 = vector.shape_cast %146 : vector<1x1x128xf32> to vector<1x128xf32>
    %148 = math.log %145 : vector<4x128xf32>
    %cst_102 = arith.constant -1.000000e+02 : f32
    %149 = vector.broadcast %cst_102 : f32 to vector<4x128xf32>
    %150 = arith.maximumf %148, %149 : vector<4x128xf32>
    %cst_103 = arith.constant dense<0.000000e+00> : vector<128xf32>
    %151 = vector.multi_reduction <add>, %150, %cst_103 [0] : vector<4x128xf32> to vector<128xf32>
    %152 = vector.shape_cast %151 : vector<128xf32> to vector<1x128xf32>
    %153 = arith.addf %147, %152 : vector<1x128xf32>
    %c13_104 = arith.constant 13 : index
    %c0_105 = arith.constant 0 : index
    %c0_106 = arith.constant 0 : index
    %154 = vector.load %arg11[%c13_104, %c0_105, %c0_106] : memref<22x1x128xf32, #tpu.memory_space<vmem>>, vector<1x1x128xf32>
    %155 = vector.shape_cast %154 : vector<1x1x128xf32> to vector<1x128xf32>
    %156 = vector.shape_cast %153 : vector<1x128xf32> to vector<1x1x128xf32>
    tpu.vector_store %arg11[%c13_104, %c0_105, %c0_106], %156 {strides = array<i32>} : memref<22x1x128xf32, #tpu.memory_space<vmem>>, vector<1x1x128xf32>,
    %c14 = arith.constant 14 : index
    %c0_107 = arith.constant 0 : index
    %c0_108 = arith.constant 0 : index
    %157 = vector.load %arg11[%c14, %c0_107, %c0_108] : memref<22x1x128xf32, #tpu.memory_space<vmem>>, vector<1x1x128xf32>
    %158 = vector.shape_cast %157 : vector<1x1x128xf32> to vector<1x128xf32>
    %159 = arith.mulf %142, %3 : vector<4x128xf32>
    %cst_109 = arith.constant dense<0.000000e+00> : vector<128xf32>
    %160 = vector.multi_reduction <add>, %159, %cst_109 [0] : vector<4x128xf32> to vector<128xf32>
    %161 = vector.shape_cast %160 : vector<128xf32> to vector<1x128xf32>
    %162 = arith.addf %158, %161 : vector<1x128xf32>
    %c14_110 = arith.constant 14 : index
    %c0_111 = arith.constant 0 : index
    %c0_112 = arith.constant 0 : index
    %163 = vector.load %arg11[%c14_110, %c0_111, %c0_112] : memref<22x1x128xf32, #tpu.memory_space<vmem>>, vector<1x1x128xf32>
    %164 = vector.shape_cast %163 : vector<1x1x128xf32> to vector<1x128xf32>
    %165 = vector.shape_cast %162 : vector<1x128xf32> to vector<1x1x128xf32>
    tpu.vector_store %arg11[%c14_110, %c0_111, %c0_112], %165 {strides = array<i32>} : memref<22x1x128xf32, #tpu.memory_space<vmem>>, vector<1x1x128xf32>,
    %c15 = arith.constant 15 : index
    %c0_113 = arith.constant 0 : index
    %c0_114 = arith.constant 0 : index
    %166 = vector.load %arg11[%c15, %c0_113, %c0_114] : memref<22x1x128xf32, #tpu.memory_space<vmem>>, vector<1x1x128xf32>
    %167 = vector.shape_cast %166 : vector<1x1x128xf32> to vector<1x128xf32>
    %cst_115 = arith.constant dense<0.000000e+00> : vector<128xf32>
    %168 = vector.multi_reduction <add>, %142, %cst_115 [0] : vector<4x128xf32> to vector<128xf32>
    %169 = vector.shape_cast %168 : vector<128xf32> to vector<1x128xf32>
    %170 = arith.addf %167, %169 : vector<1x128xf32>
    %c15_116 = arith.constant 15 : index
    %c0_117 = arith.constant 0 : index
    %c0_118 = arith.constant 0 : index
    %171 = vector.load %arg11[%c15_116, %c0_117, %c0_118] : memref<22x1x128xf32, #tpu.memory_space<vmem>>, vector<1x1x128xf32>
    %172 = vector.shape_cast %171 : vector<1x1x128xf32> to vector<1x128xf32>
    %173 = vector.shape_cast %170 : vector<1x128xf32> to vector<1x1x128xf32>
    tpu.vector_store %arg11[%c15_116, %c0_117, %c0_118], %173 {strides = array<i32>} : memref<22x1x128xf32, #tpu.memory_space<vmem>>, vector<1x1x128xf32>,
    %c0_119 = arith.constant 0 : index
    %c0_120 = arith.constant 0 : index
    %174 = vector.load %arg7[%c0_119, %c0_120] : memref<4x128xf32, #tpu.memory_space<vmem>>, vector<4x128xf32>
    %cst_121 = arith.constant 1.000000e+00 : f32
    %175 = vector.broadcast %cst_121 : f32 to vector<4x128xf32>
    %176 = arith.subf %175, %174 : vector<4x128xf32>
    %177 = arith.select %5, %174, %176 : vector<4x128xi1>, vector<4x128xf32>
    %c16 = arith.constant 16 : index
    %c0_122 = arith.constant 0 : index
    %c0_123 = arith.constant 0 : index
    %178 = vector.load %arg11[%c16, %c0_122, %c0_123] : memref<22x1x128xf32, #tpu.memory_space<vmem>>, vector<1x1x128xf32>
    %179 = vector.shape_cast %178 : vector<1x1x128xf32> to vector<1x128xf32>
    %180 = math.log %177 : vector<4x128xf32>
    %cst_124 = arith.constant -1.000000e+02 : f32
    %181 = vector.broadcast %cst_124 : f32 to vector<4x128xf32>
    %182 = arith.maximumf %180, %181 : vector<4x128xf32>
    %cst_125 = arith.constant dense<0.000000e+00> : vector<128xf32>
    %183 = vector.multi_reduction <add>, %182, %cst_125 [0] : vector<4x128xf32> to vector<128xf32>
    %184 = vector.shape_cast %183 : vector<128xf32> to vector<1x128xf32>
    %185 = arith.addf %179, %184 : vector<1x128xf32>
    %c16_126 = arith.constant 16 : index
    %c0_127 = arith.constant 0 : index
    %c0_128 = arith.constant 0 : index
    %186 = vector.load %arg11[%c16_126, %c0_127, %c0_128] : memref<22x1x128xf32, #tpu.memory_space<vmem>>, vector<1x1x128xf32>
    %187 = vector.shape_cast %186 : vector<1x1x128xf32> to vector<1x128xf32>
    %188 = vector.shape_cast %185 : vector<1x128xf32> to vector<1x1x128xf32>
    tpu.vector_store %arg11[%c16_126, %c0_127, %c0_128], %188 {strides = array<i32>} : memref<22x1x128xf32, #tpu.memory_space<vmem>>, vector<1x1x128xf32>,
    %c17 = arith.constant 17 : index
    %c0_129 = arith.constant 0 : index
    %c0_130 = arith.constant 0 : index
    %189 = vector.load %arg11[%c17, %c0_129, %c0_130] : memref<22x1x128xf32, #tpu.memory_space<vmem>>, vector<1x1x128xf32>
    %190 = vector.shape_cast %189 : vector<1x1x128xf32> to vector<1x128xf32>
    %191 = arith.mulf %174, %3 : vector<4x128xf32>
    %cst_131 = arith.constant dense<0.000000e+00> : vector<128xf32>
    %192 = vector.multi_reduction <add>, %191, %cst_131 [0] : vector<4x128xf32> to vector<128xf32>
    %193 = vector.shape_cast %192 : vector<128xf32> to vector<1x128xf32>
    %194 = arith.addf %190, %193 : vector<1x128xf32>
    %c17_132 = arith.constant 17 : index
    %c0_133 = arith.constant 0 : index
    %c0_134 = arith.constant 0 : index
    %195 = vector.load %arg11[%c17_132, %c0_133, %c0_134] : memref<22x1x128xf32, #tpu.memory_space<vmem>>, vector<1x1x128xf32>
    %196 = vector.shape_cast %195 : vector<1x1x128xf32> to vector<1x128xf32>
    %197 = vector.shape_cast %194 : vector<1x128xf32> to vector<1x1x128xf32>
    tpu.vector_store %arg11[%c17_132, %c0_133, %c0_134], %197 {strides = array<i32>} : memref<22x1x128xf32, #tpu.memory_space<vmem>>, vector<1x1x128xf32>,
    %c18 = arith.constant 18 : index
    %c0_135 = arith.constant 0 : index
    %c0_136 = arith.constant 0 : index
    %198 = vector.load %arg11[%c18, %c0_135, %c0_136] : memref<22x1x128xf32, #tpu.memory_space<vmem>>, vector<1x1x128xf32>
    %199 = vector.shape_cast %198 : vector<1x1x128xf32> to vector<1x128xf32>
    %cst_137 = arith.constant dense<0.000000e+00> : vector<128xf32>
    %200 = vector.multi_reduction <add>, %174, %cst_137 [0] : vector<4x128xf32> to vector<128xf32>
    %201 = vector.shape_cast %200 : vector<128xf32> to vector<1x128xf32>
    %202 = arith.addf %199, %201 : vector<1x128xf32>
    %c18_138 = arith.constant 18 : index
    %c0_139 = arith.constant 0 : index
    %c0_140 = arith.constant 0 : index
    %203 = vector.load %arg11[%c18_138, %c0_139, %c0_140] : memref<22x1x128xf32, #tpu.memory_space<vmem>>, vector<1x1x128xf32>
    %204 = vector.shape_cast %203 : vector<1x1x128xf32> to vector<1x128xf32>
    %205 = vector.shape_cast %202 : vector<1x128xf32> to vector<1x1x128xf32>
    tpu.vector_store %arg11[%c18_138, %c0_139, %c0_140], %205 {strides = array<i32>} : memref<22x1x128xf32, #tpu.memory_space<vmem>>, vector<1x1x128xf32>,
    %c0_141 = arith.constant 0 : index
    %c0_142 = arith.constant 0 : index
    %206 = vector.load %arg8[%c0_141, %c0_142] : memref<4x128xf32, #tpu.memory_space<vmem>>, vector<4x128xf32>
    %cst_143 = arith.constant 1.000000e+00 : f32
    %207 = vector.broadcast %cst_143 : f32 to vector<4x128xf32>
    %208 = arith.subf %207, %206 : vector<4x128xf32>
    %209 = arith.select %5, %206, %208 : vector<4x128xi1>, vector<4x128xf32>
    %c19 = arith.constant 19 : index
    %c0_144 = arith.constant 0 : index
    %c0_145 = arith.constant 0 : index
    %210 = vector.load %arg11[%c19, %c0_144, %c0_145] : memref<22x1x128xf32, #tpu.memory_space<vmem>>, vector<1x1x128xf32>
    %211 = vector.shape_cast %210 : vector<1x1x128xf32> to vector<1x128xf32>
    %212 = math.log %209 : vector<4x128xf32>
    %cst_146 = arith.constant -1.000000e+02 : f32
    %213 = vector.broadcast %cst_146 : f32 to vector<4x128xf32>
    %214 = arith.maximumf %212, %213 : vector<4x128xf32>
    %cst_147 = arith.constant dense<0.000000e+00> : vector<128xf32>
    %215 = vector.multi_reduction <add>, %214, %cst_147 [0] : vector<4x128xf32> to vector<128xf32>
    %216 = vector.shape_cast %215 : vector<128xf32> to vector<1x128xf32>
    %217 = arith.addf %211, %216 : vector<1x128xf32>
    %c19_148 = arith.constant 19 : index
    %c0_149 = arith.constant 0 : index
    %c0_150 = arith.constant 0 : index
    %218 = vector.load %arg11[%c19_148, %c0_149, %c0_150] : memref<22x1x128xf32, #tpu.memory_space<vmem>>, vector<1x1x128xf32>
    %219 = vector.shape_cast %218 : vector<1x1x128xf32> to vector<1x128xf32>
    %220 = vector.shape_cast %217 : vector<1x128xf32> to vector<1x1x128xf32>
    tpu.vector_store %arg11[%c19_148, %c0_149, %c0_150], %220 {strides = array<i32>} : memref<22x1x128xf32, #tpu.memory_space<vmem>>, vector<1x1x128xf32>,
    %c20 = arith.constant 20 : index
    %c0_151 = arith.constant 0 : index
    %c0_152 = arith.constant 0 : index
    %221 = vector.load %arg11[%c20, %c0_151, %c0_152] : memref<22x1x128xf32, #tpu.memory_space<vmem>>, vector<1x1x128xf32>
    %222 = vector.shape_cast %221 : vector<1x1x128xf32> to vector<1x128xf32>
    %223 = arith.mulf %206, %3 : vector<4x128xf32>
    %cst_153 = arith.constant dense<0.000000e+00> : vector<128xf32>
    %224 = vector.multi_reduction <add>, %223, %cst_153 [0] : vector<4x128xf32> to vector<128xf32>
    %225 = vector.shape_cast %224 : vector<128xf32> to vector<1x128xf32>
    %226 = arith.addf %222, %225 : vector<1x128xf32>
    %c20_154 = arith.constant 20 : index
    %c0_155 = arith.constant 0 : index
    %c0_156 = arith.constant 0 : index
    %227 = vector.load %arg11[%c20_154, %c0_155, %c0_156] : memref<22x1x128xf32, #tpu.memory_space<vmem>>, vector<1x1x128xf32>
    %228 = vector.shape_cast %227 : vector<1x1x128xf32> to vector<1x128xf32>
    %229 = vector.shape_cast %226 : vector<1x128xf32> to vector<1x1x128xf32>
    tpu.vector_store %arg11[%c20_154, %c0_155, %c0_156], %229 {strides = array<i32>} : memref<22x1x128xf32, #tpu.memory_space<vmem>>, vector<1x1x128xf32>,
    %c21 = arith.constant 21 : index
    %c0_157 = arith.constant 0 : index
    %c0_158 = arith.constant 0 : index
    %230 = vector.load %arg11[%c21, %c0_157, %c0_158] : memref<22x1x128xf32, #tpu.memory_space<vmem>>, vector<1x1x128xf32>
    %231 = vector.shape_cast %230 : vector<1x1x128xf32> to vector<1x128xf32>
    %cst_159 = arith.constant dense<0.000000e+00> : vector<128xf32>
    %232 = vector.multi_reduction <add>, %206, %cst_159 [0] : vector<4x128xf32> to vector<128xf32>
    %233 = vector.shape_cast %232 : vector<128xf32> to vector<1x128xf32>
    %234 = arith.addf %231, %233 : vector<1x128xf32>
    %c21_160 = arith.constant 21 : index
    %c0_161 = arith.constant 0 : index
    %c0_162 = arith.constant 0 : index
    %235 = vector.load %arg11[%c21_160, %c0_161, %c0_162] : memref<22x1x128xf32, #tpu.memory_space<vmem>>, vector<1x1x128xf32>
    %236 = vector.shape_cast %235 : vector<1x1x128xf32> to vector<1x128xf32>
    %237 = vector.shape_cast %234 : vector<1x128xf32> to vector<1x1x128xf32>
    tpu.vector_store %arg11[%c21_160, %c0_161, %c0_162], %237 {strides = array<i32>} : memref<22x1x128xf32, #tpu.memory_space<vmem>>, vector<1x1x128xf32>,
    %c0_i32_163 = arith.constant 0 : i32
    %238 = arith.cmpi eq, %arg1, %c0_i32_163 : i32
    %239 = arith.extui %238 : i1 to i32
    %c0_i32_164 = arith.constant 0 : i32
    %240 = arith.cmpi ne, %239, %c0_i32_164 : i32
    scf.if %240 {
      %c0_165 = arith.constant 0 : index
      %c0_166 = arith.constant 0 : index
      %c0_167 = arith.constant 0 : index
      %241 = vector.load %arg11[%c0_165, %c0_166, %c0_167] : memref<22x1x128xf32, #tpu.memory_space<vmem>>, vector<1x1x128xf32>
      %242 = vector.shape_cast %241 : vector<1x1x128xf32> to vector<1x128xf32>
      %243 = vector.shape_cast %242 : vector<1x128xf32> to vector<1x1x128xf32>
      %cst_168 = arith.constant dense<0.000000e+00> : vector<1xf32>
      %244 = vector.multi_reduction <add>, %243, %cst_168 [1, 2] : vector<1x1x128xf32> to vector<1xf32>
      %245 = vector.shape_cast %244 : vector<1xf32> to vector<1x1x1xf32>
      %246 = vector.extract %245[0, 0, 0] : f32 from vector<1x1x1xf32>
      %c0_169 = arith.constant 0 : index
      %c0_170 = arith.constant 0 : index
      %247 = memref.load %arg10[%c0_169, %c0_170] : memref<1x22xf32, #tpu.memory_space<smem>>
      memref.store %246, %arg10[%c0_169, %c0_170] : memref<1x22xf32, #tpu.memory_space<smem>>
      %c1_171 = arith.constant 1 : index
      %c0_172 = arith.constant 0 : index
      %c0_173 = arith.constant 0 : index
      %248 = vector.load %arg11[%c1_171, %c0_172, %c0_173] : memref<22x1x128xf32, #tpu.memory_space<vmem>>, vector<1x1x128xf32>
      %249 = vector.shape_cast %248 : vector<1x1x128xf32> to vector<1x128xf32>
      %250 = vector.shape_cast %249 : vector<1x128xf32> to vector<1x1x128xf32>
      %cst_174 = arith.constant dense<0.000000e+00> : vector<1xf32>
      %251 = vector.multi_reduction <add>, %250, %cst_174 [1, 2] : vector<1x1x128xf32> to vector<1xf32>
      %252 = vector.shape_cast %251 : vector<1xf32> to vector<1x1x1xf32>
      %253 = vector.extract %252[0, 0, 0] : f32 from vector<1x1x1xf32>
      %c0_175 = arith.constant 0 : index
      %c1_176 = arith.constant 1 : index
      %254 = memref.load %arg10[%c0_175, %c1_176] : memref<1x22xf32, #tpu.memory_space<smem>>
      memref.store %253, %arg10[%c0_175, %c1_176] : memref<1x22xf32, #tpu.memory_space<smem>>
      %c2_177 = arith.constant 2 : index
      %c0_178 = arith.constant 0 : index
      %c0_179 = arith.constant 0 : index
      %255 = vector.load %arg11[%c2_177, %c0_178, %c0_179] : memref<22x1x128xf32, #tpu.memory_space<vmem>>, vector<1x1x128xf32>
      %256 = vector.shape_cast %255 : vector<1x1x128xf32> to vector<1x128xf32>
      %257 = vector.shape_cast %256 : vector<1x128xf32> to vector<1x1x128xf32>
      %cst_180 = arith.constant dense<0.000000e+00> : vector<1xf32>
      %258 = vector.multi_reduction <add>, %257, %cst_180 [1, 2] : vector<1x1x128xf32> to vector<1xf32>
      %259 = vector.shape_cast %258 : vector<1xf32> to vector<1x1x1xf32>
      %260 = vector.extract %259[0, 0, 0] : f32 from vector<1x1x1xf32>
      %c0_181 = arith.constant 0 : index
      %c2_182 = arith.constant 2 : index
      %261 = memref.load %arg10[%c0_181, %c2_182] : memref<1x22xf32, #tpu.memory_space<smem>>
      memref.store %260, %arg10[%c0_181, %c2_182] : memref<1x22xf32, #tpu.memory_space<smem>>
      %c3_183 = arith.constant 3 : index
      %c0_184 = arith.constant 0 : index
      %c0_185 = arith.constant 0 : index
      %262 = vector.load %arg11[%c3_183, %c0_184, %c0_185] : memref<22x1x128xf32, #tpu.memory_space<vmem>>, vector<1x1x128xf32>
      %263 = vector.shape_cast %262 : vector<1x1x128xf32> to vector<1x128xf32>
      %264 = vector.shape_cast %263 : vector<1x128xf32> to vector<1x1x128xf32>
      %cst_186 = arith.constant dense<0.000000e+00> : vector<1xf32>
      %265 = vector.multi_reduction <add>, %264, %cst_186 [1, 2] : vector<1x1x128xf32> to vector<1xf32>
      %266 = vector.shape_cast %265 : vector<1xf32> to vector<1x1x1xf32>
      %267 = vector.extract %266[0, 0, 0] : f32 from vector<1x1x1xf32>
      %c0_187 = arith.constant 0 : index
      %c3_188 = arith.constant 3 : index
      %268 = memref.load %arg10[%c0_187, %c3_188] : memref<1x22xf32, #tpu.memory_space<smem>>
      memref.store %267, %arg10[%c0_187, %c3_188] : memref<1x22xf32, #tpu.memory_space<smem>>
      %c4_189 = arith.constant 4 : index
      %c0_190 = arith.constant 0 : index
      %c0_191 = arith.constant 0 : index
      %269 = vector.load %arg11[%c4_189, %c0_190, %c0_191] : memref<22x1x128xf32, #tpu.memory_space<vmem>>, vector<1x1x128xf32>
      %270 = vector.shape_cast %269 : vector<1x1x128xf32> to vector<1x128xf32>
      %271 = vector.shape_cast %270 : vector<1x128xf32> to vector<1x1x128xf32>
      %cst_192 = arith.constant dense<0.000000e+00> : vector<1xf32>
      %272 = vector.multi_reduction <add>, %271, %cst_192 [1, 2] : vector<1x1x128xf32> to vector<1xf32>
      %273 = vector.shape_cast %272 : vector<1xf32> to vector<1x1x1xf32>
      %274 = vector.extract %273[0, 0, 0] : f32 from vector<1x1x1xf32>
      %c0_193 = arith.constant 0 : index
      %c4_194 = arith.constant 4 : index
      %275 = memref.load %arg10[%c0_193, %c4_194] : memref<1x22xf32, #tpu.memory_space<smem>>
      memref.store %274, %arg10[%c0_193, %c4_194] : memref<1x22xf32, #tpu.memory_space<smem>>
      %c5_195 = arith.constant 5 : index
      %c0_196 = arith.constant 0 : index
      %c0_197 = arith.constant 0 : index
      %276 = vector.load %arg11[%c5_195, %c0_196, %c0_197] : memref<22x1x128xf32, #tpu.memory_space<vmem>>, vector<1x1x128xf32>
      %277 = vector.shape_cast %276 : vector<1x1x128xf32> to vector<1x128xf32>
      %278 = vector.shape_cast %277 : vector<1x128xf32> to vector<1x1x128xf32>
      %cst_198 = arith.constant dense<0.000000e+00> : vector<1xf32>
      %279 = vector.multi_reduction <add>, %278, %cst_198 [1, 2] : vector<1x1x128xf32> to vector<1xf32>
      %280 = vector.shape_cast %279 : vector<1xf32> to vector<1x1x1xf32>
      %281 = vector.extract %280[0, 0, 0] : f32 from vector<1x1x1xf32>
      %c0_199 = arith.constant 0 : index
      %c5_200 = arith.constant 5 : index
      %282 = memref.load %arg10[%c0_199, %c5_200] : memref<1x22xf32, #tpu.memory_space<smem>>
      memref.store %281, %arg10[%c0_199, %c5_200] : memref<1x22xf32, #tpu.memory_space<smem>>
      %c6_201 = arith.constant 6 : index
      %c0_202 = arith.constant 0 : index
      %c0_203 = arith.constant 0 : index
      %283 = vector.load %arg11[%c6_201, %c0_202, %c0_203] : memref<22x1x128xf32, #tpu.memory_space<vmem>>, vector<1x1x128xf32>
      %284 = vector.shape_cast %283 : vector<1x1x128xf32> to vector<1x128xf32>
      %285 = vector.shape_cast %284 : vector<1x128xf32> to vector<1x1x128xf32>
      %cst_204 = arith.constant dense<0.000000e+00> : vector<1xf32>
      %286 = vector.multi_reduction <add>, %285, %cst_204 [1, 2] : vector<1x1x128xf32> to vector<1xf32>
      %287 = vector.shape_cast %286 : vector<1xf32> to vector<1x1x1xf32>
      %288 = vector.extract %287[0, 0, 0] : f32 from vector<1x1x1xf32>
      %c0_205 = arith.constant 0 : index
      %c6_206 = arith.constant 6 : index
      %289 = memref.load %arg10[%c0_205, %c6_206] : memref<1x22xf32, #tpu.memory_space<smem>>
      memref.store %288, %arg10[%c0_205, %c6_206] : memref<1x22xf32, #tpu.memory_space<smem>>
      %c7_207 = arith.constant 7 : index
      %c0_208 = arith.constant 0 : index
      %c0_209 = arith.constant 0 : index
      %290 = vector.load %arg11[%c7_207, %c0_208, %c0_209] : memref<22x1x128xf32, #tpu.memory_space<vmem>>, vector<1x1x128xf32>
      %291 = vector.shape_cast %290 : vector<1x1x128xf32> to vector<1x128xf32>
      %292 = vector.shape_cast %291 : vector<1x128xf32> to vector<1x1x128xf32>
      %cst_210 = arith.constant dense<0.000000e+00> : vector<1xf32>
      %293 = vector.multi_reduction <add>, %292, %cst_210 [1, 2] : vector<1x1x128xf32> to vector<1xf32>
      %294 = vector.shape_cast %293 : vector<1xf32> to vector<1x1x1xf32>
      %295 = vector.extract %294[0, 0, 0] : f32 from vector<1x1x1xf32>
      %c0_211 = arith.constant 0 : index
      %c7_212 = arith.constant 7 : index
      %296 = memref.load %arg10[%c0_211, %c7_212] : memref<1x22xf32, #tpu.memory_space<smem>>
      memref.store %295, %arg10[%c0_211, %c7_212] : memref<1x22xf32, #tpu.memory_space<smem>>
      %c8_213 = arith.constant 8 : index
      %c0_214 = arith.constant 0 : index
      %c0_215 = arith.constant 0 : index
      %297 = vector.load %arg11[%c8_213, %c0_214, %c0_215] : memref<22x1x128xf32, #tpu.memory_space<vmem>>, vector<1x1x128xf32>
      %298 = vector.shape_cast %297 : vector<1x1x128xf32> to vector<1x128xf32>
      %299 = vector.shape_cast %298 : vector<1x128xf32> to vector<1x1x128xf32>
      %cst_216 = arith.constant dense<0.000000e+00> : vector<1xf32>
      %300 = vector.multi_reduction <add>, %299, %cst_216 [1, 2] : vector<1x1x128xf32> to vector<1xf32>
      %301 = vector.shape_cast %300 : vector<1xf32> to vector<1x1x1xf32>
      %302 = vector.extract %301[0, 0, 0] : f32 from vector<1x1x1xf32>
      %c0_217 = arith.constant 0 : index
      %c8_218 = arith.constant 8 : index
      %303 = memref.load %arg10[%c0_217, %c8_218] : memref<1x22xf32, #tpu.memory_space<smem>>
      memref.store %302, %arg10[%c0_217, %c8_218] : memref<1x22xf32, #tpu.memory_space<smem>>
      %c9_219 = arith.constant 9 : index
      %c0_220 = arith.constant 0 : index
      %c0_221 = arith.constant 0 : index
      %304 = vector.load %arg11[%c9_219, %c0_220, %c0_221] : memref<22x1x128xf32, #tpu.memory_space<vmem>>, vector<1x1x128xf32>
      %305 = vector.shape_cast %304 : vector<1x1x128xf32> to vector<1x128xf32>
      %306 = vector.shape_cast %305 : vector<1x128xf32> to vector<1x1x128xf32>
      %cst_222 = arith.constant dense<0.000000e+00> : vector<1xf32>
      %307 = vector.multi_reduction <add>, %306, %cst_222 [1, 2] : vector<1x1x128xf32> to vector<1xf32>
      %308 = vector.shape_cast %307 : vector<1xf32> to vector<1x1x1xf32>
      %309 = vector.extract %308[0, 0, 0] : f32 from vector<1x1x1xf32>
      %c0_223 = arith.constant 0 : index
      %c9_224 = arith.constant 9 : index
      %310 = memref.load %arg10[%c0_223, %c9_224] : memref<1x22xf32, #tpu.memory_space<smem>>
      memref.store %309, %arg10[%c0_223, %c9_224] : memref<1x22xf32, #tpu.memory_space<smem>>
      %c10_225 = arith.constant 10 : index
      %c0_226 = arith.constant 0 : index
      %c0_227 = arith.constant 0 : index
      %311 = vector.load %arg11[%c10_225, %c0_226, %c0_227] : memref<22x1x128xf32, #tpu.memory_space<vmem>>, vector<1x1x128xf32>
      %312 = vector.shape_cast %311 : vector<1x1x128xf32> to vector<1x128xf32>
      %313 = vector.shape_cast %312 : vector<1x128xf32> to vector<1x1x128xf32>
      %cst_228 = arith.constant dense<0.000000e+00> : vector<1xf32>
      %314 = vector.multi_reduction <add>, %313, %cst_228 [1, 2] : vector<1x1x128xf32> to vector<1xf32>
      %315 = vector.shape_cast %314 : vector<1xf32> to vector<1x1x1xf32>
      %316 = vector.extract %315[0, 0, 0] : f32 from vector<1x1x1xf32>
      %c0_229 = arith.constant 0 : index
      %c10_230 = arith.constant 10 : index
      %317 = memref.load %arg10[%c0_229, %c10_230] : memref<1x22xf32, #tpu.memory_space<smem>>
      memref.store %316, %arg10[%c0_229, %c10_230] : memref<1x22xf32, #tpu.memory_space<smem>>
      %c11_231 = arith.constant 11 : index
      %c0_232 = arith.constant 0 : index
      %c0_233 = arith.constant 0 : index
      %318 = vector.load %arg11[%c11_231, %c0_232, %c0_233] : memref<22x1x128xf32, #tpu.memory_space<vmem>>, vector<1x1x128xf32>
      %319 = vector.shape_cast %318 : vector<1x1x128xf32> to vector<1x128xf32>
      %320 = vector.shape_cast %319 : vector<1x128xf32> to vector<1x1x128xf32>
      %cst_234 = arith.constant dense<0.000000e+00> : vector<1xf32>
      %321 = vector.multi_reduction <add>, %320, %cst_234 [1, 2] : vector<1x1x128xf32> to vector<1xf32>
      %322 = vector.shape_cast %321 : vector<1xf32> to vector<1x1x1xf32>
      %323 = vector.extract %322[0, 0, 0] : f32 from vector<1x1x1xf32>
      %c0_235 = arith.constant 0 : index
      %c11_236 = arith.constant 11 : index
      %324 = memref.load %arg10[%c0_235, %c11_236] : memref<1x22xf32, #tpu.memory_space<smem>>
      memref.store %323, %arg10[%c0_235, %c11_236] : memref<1x22xf32, #tpu.memory_space<smem>>
      %c12_237 = arith.constant 12 : index
      %c0_238 = arith.constant 0 : index
      %c0_239 = arith.constant 0 : index
      %325 = vector.load %arg11[%c12_237, %c0_238, %c0_239] : memref<22x1x128xf32, #tpu.memory_space<vmem>>, vector<1x1x128xf32>
      %326 = vector.shape_cast %325 : vector<1x1x128xf32> to vector<1x128xf32>
      %327 = vector.shape_cast %326 : vector<1x128xf32> to vector<1x1x128xf32>
      %cst_240 = arith.constant dense<0.000000e+00> : vector<1xf32>
      %328 = vector.multi_reduction <add>, %327, %cst_240 [1, 2] : vector<1x1x128xf32> to vector<1xf32>
      %329 = vector.shape_cast %328 : vector<1xf32> to vector<1x1x1xf32>
      %330 = vector.extract %329[0, 0, 0] : f32 from vector<1x1x1xf32>
      %c0_241 = arith.constant 0 : index
      %c12_242 = arith.constant 12 : index
      %331 = memref.load %arg10[%c0_241, %c12_242] : memref<1x22xf32, #tpu.memory_space<smem>>
      memref.store %330, %arg10[%c0_241, %c12_242] : memref<1x22xf32, #tpu.memory_space<smem>>
      %c13_243 = arith.constant 13 : index
      %c0_244 = arith.constant 0 : index
      %c0_245 = arith.constant 0 : index
      %332 = vector.load %arg11[%c13_243, %c0_244, %c0_245] : memref<22x1x128xf32, #tpu.memory_space<vmem>>, vector<1x1x128xf32>
      %333 = vector.shape_cast %332 : vector<1x1x128xf32> to vector<1x128xf32>
      %334 = vector.shape_cast %333 : vector<1x128xf32> to vector<1x1x128xf32>
      %cst_246 = arith.constant dense<0.000000e+00> : vector<1xf32>
      %335 = vector.multi_reduction <add>, %334, %cst_246 [1, 2] : vector<1x1x128xf32> to vector<1xf32>
      %336 = vector.shape_cast %335 : vector<1xf32> to vector<1x1x1xf32>
      %337 = vector.extract %336[0, 0, 0] : f32 from vector<1x1x1xf32>
      %c0_247 = arith.constant 0 : index
      %c13_248 = arith.constant 13 : index
      %338 = memref.load %arg10[%c0_247, %c13_248] : memref<1x22xf32, #tpu.memory_space<smem>>
      memref.store %337, %arg10[%c0_247, %c13_248] : memref<1x22xf32, #tpu.memory_space<smem>>
      %c14_249 = arith.constant 14 : index
      %c0_250 = arith.constant 0 : index
      %c0_251 = arith.constant 0 : index
      %339 = vector.load %arg11[%c14_249, %c0_250, %c0_251] : memref<22x1x128xf32, #tpu.memory_space<vmem>>, vector<1x1x128xf32>
      %340 = vector.shape_cast %339 : vector<1x1x128xf32> to vector<1x128xf32>
      %341 = vector.shape_cast %340 : vector<1x128xf32> to vector<1x1x128xf32>
      %cst_252 = arith.constant dense<0.000000e+00> : vector<1xf32>
      %342 = vector.multi_reduction <add>, %341, %cst_252 [1, 2] : vector<1x1x128xf32> to vector<1xf32>
      %343 = vector.shape_cast %342 : vector<1xf32> to vector<1x1x1xf32>
      %344 = vector.extract %343[0, 0, 0] : f32 from vector<1x1x1xf32>
      %c0_253 = arith.constant 0 : index
      %c14_254 = arith.constant 14 : index
      %345 = memref.load %arg10[%c0_253, %c14_254] : memref<1x22xf32, #tpu.memory_space<smem>>
      memref.store %344, %arg10[%c0_253, %c14_254] : memref<1x22xf32, #tpu.memory_space<smem>>
      %c15_255 = arith.constant 15 : index
      %c0_256 = arith.constant 0 : index
      %c0_257 = arith.constant 0 : index
      %346 = vector.load %arg11[%c15_255, %c0_256, %c0_257] : memref<22x1x128xf32, #tpu.memory_space<vmem>>, vector<1x1x128xf32>
      %347 = vector.shape_cast %346 : vector<1x1x128xf32> to vector<1x128xf32>
      %348 = vector.shape_cast %347 : vector<1x128xf32> to vector<1x1x128xf32>
      %cst_258 = arith.constant dense<0.000000e+00> : vector<1xf32>
      %349 = vector.multi_reduction <add>, %348, %cst_258 [1, 2] : vector<1x1x128xf32> to vector<1xf32>
      %350 = vector.shape_cast %349 : vector<1xf32> to vector<1x1x1xf32>
      %351 = vector.extract %350[0, 0, 0] : f32 from vector<1x1x1xf32>
      %c0_259 = arith.constant 0 : index
      %c15_260 = arith.constant 15 : index
      %352 = memref.load %arg10[%c0_259, %c15_260] : memref<1x22xf32, #tpu.memory_space<smem>>
      memref.store %351, %arg10[%c0_259, %c15_260] : memref<1x22xf32, #tpu.memory_space<smem>>
      %c16_261 = arith.constant 16 : index
      %c0_262 = arith.constant 0 : index
      %c0_263 = arith.constant 0 : index
      %353 = vector.load %arg11[%c16_261, %c0_262, %c0_263] : memref<22x1x128xf32, #tpu.memory_space<vmem>>, vector<1x1x128xf32>
      %354 = vector.shape_cast %353 : vector<1x1x128xf32> to vector<1x128xf32>
      %355 = vector.shape_cast %354 : vector<1x128xf32> to vector<1x1x128xf32>
      %cst_264 = arith.constant dense<0.000000e+00> : vector<1xf32>
      %356 = vector.multi_reduction <add>, %355, %cst_264 [1, 2] : vector<1x1x128xf32> to vector<1xf32>
      %357 = vector.shape_cast %356 : vector<1xf32> to vector<1x1x1xf32>
      %358 = vector.extract %357[0, 0, 0] : f32 from vector<1x1x1xf32>
      %c0_265 = arith.constant 0 : index
      %c16_266 = arith.constant 16 : index
      %359 = memref.load %arg10[%c0_265, %c16_266] : memref<1x22xf32, #tpu.memory_space<smem>>
      memref.store %358, %arg10[%c0_265, %c16_266] : memref<1x22xf32, #tpu.memory_space<smem>>
      %c17_267 = arith.constant 17 : index
      %c0_268 = arith.constant 0 : index
      %c0_269 = arith.constant 0 : index
      %360 = vector.load %arg11[%c17_267, %c0_268, %c0_269] : memref<22x1x128xf32, #tpu.memory_space<vmem>>, vector<1x1x128xf32>
      %361 = vector.shape_cast %360 : vector<1x1x128xf32> to vector<1x128xf32>
      %362 = vector.shape_cast %361 : vector<1x128xf32> to vector<1x1x128xf32>
      %cst_270 = arith.constant dense<0.000000e+00> : vector<1xf32>
      %363 = vector.multi_reduction <add>, %362, %cst_270 [1, 2] : vector<1x1x128xf32> to vector<1xf32>
      %364 = vector.shape_cast %363 : vector<1xf32> to vector<1x1x1xf32>
      %365 = vector.extract %364[0, 0, 0] : f32 from vector<1x1x1xf32>
      %c0_271 = arith.constant 0 : index
      %c17_272 = arith.constant 17 : index
      %366 = memref.load %arg10[%c0_271, %c17_272] : memref<1x22xf32, #tpu.memory_space<smem>>
      memref.store %365, %arg10[%c0_271, %c17_272] : memref<1x22xf32, #tpu.memory_space<smem>>
      %c18_273 = arith.constant 18 : index
      %c0_274 = arith.constant 0 : index
      %c0_275 = arith.constant 0 : index
      %367 = vector.load %arg11[%c18_273, %c0_274, %c0_275] : memref<22x1x128xf32, #tpu.memory_space<vmem>>, vector<1x1x128xf32>
      %368 = vector.shape_cast %367 : vector<1x1x128xf32> to vector<1x128xf32>
      %369 = vector.shape_cast %368 : vector<1x128xf32> to vector<1x1x128xf32>
      %cst_276 = arith.constant dense<0.000000e+00> : vector<1xf32>
      %370 = vector.multi_reduction <add>, %369, %cst_276 [1, 2] : vector<1x1x128xf32> to vector<1xf32>
      %371 = vector.shape_cast %370 : vector<1xf32> to vector<1x1x1xf32>
      %372 = vector.extract %371[0, 0, 0] : f32 from vector<1x1x1xf32>
      %c0_277 = arith.constant 0 : index
      %c18_278 = arith.constant 18 : index
      %373 = memref.load %arg10[%c0_277, %c18_278] : memref<1x22xf32, #tpu.memory_space<smem>>
      memref.store %372, %arg10[%c0_277, %c18_278] : memref<1x22xf32, #tpu.memory_space<smem>>
      %c19_279 = arith.constant 19 : index
      %c0_280 = arith.constant 0 : index
      %c0_281 = arith.constant 0 : index
      %374 = vector.load %arg11[%c19_279, %c0_280, %c0_281] : memref<22x1x128xf32, #tpu.memory_space<vmem>>, vector<1x1x128xf32>
      %375 = vector.shape_cast %374 : vector<1x1x128xf32> to vector<1x128xf32>
      %376 = vector.shape_cast %375 : vector<1x128xf32> to vector<1x1x128xf32>
      %cst_282 = arith.constant dense<0.000000e+00> : vector<1xf32>
      %377 = vector.multi_reduction <add>, %376, %cst_282 [1, 2] : vector<1x1x128xf32> to vector<1xf32>
      %378 = vector.shape_cast %377 : vector<1xf32> to vector<1x1x1xf32>
      %379 = vector.extract %378[0, 0, 0] : f32 from vector<1x1x1xf32>
      %c0_283 = arith.constant 0 : index
      %c19_284 = arith.constant 19 : index
      %380 = memref.load %arg10[%c0_283, %c19_284] : memref<1x22xf32, #tpu.memory_space<smem>>
      memref.store %379, %arg10[%c0_283, %c19_284] : memref<1x22xf32, #tpu.memory_space<smem>>
      %c20_285 = arith.constant 20 : index
      %c0_286 = arith.constant 0 : index
      %c0_287 = arith.constant 0 : index
      %381 = vector.load %arg11[%c20_285, %c0_286, %c0_287] : memref<22x1x128xf32, #tpu.memory_space<vmem>>, vector<1x1x128xf32>
      %382 = vector.shape_cast %381 : vector<1x1x128xf32> to vector<1x128xf32>
      %383 = vector.shape_cast %382 : vector<1x128xf32> to vector<1x1x128xf32>
      %cst_288 = arith.constant dense<0.000000e+00> : vector<1xf32>
      %384 = vector.multi_reduction <add>, %383, %cst_288 [1, 2] : vector<1x1x128xf32> to vector<1xf32>
      %385 = vector.shape_cast %384 : vector<1xf32> to vector<1x1x1xf32>
      %386 = vector.extract %385[0, 0, 0] : f32 from vector<1x1x1xf32>
      %c0_289 = arith.constant 0 : index
      %c20_290 = arith.constant 20 : index
      %387 = memref.load %arg10[%c0_289, %c20_290] : memref<1x22xf32, #tpu.memory_space<smem>>
      memref.store %386, %arg10[%c0_289, %c20_290] : memref<1x22xf32, #tpu.memory_space<smem>>
      %c21_291 = arith.constant 21 : index
      %c0_292 = arith.constant 0 : index
      %c0_293 = arith.constant 0 : index
      %388 = vector.load %arg11[%c21_291, %c0_292, %c0_293] : memref<22x1x128xf32, #tpu.memory_space<vmem>>, vector<1x1x128xf32>
      %389 = vector.shape_cast %388 : vector<1x1x128xf32> to vector<1x128xf32>
      %390 = vector.shape_cast %389 : vector<1x128xf32> to vector<1x1x128xf32>
      %cst_294 = arith.constant dense<0.000000e+00> : vector<1xf32>
      %391 = vector.multi_reduction <add>, %390, %cst_294 [1, 2] : vector<1x1x128xf32> to vector<1xf32>
      %392 = vector.shape_cast %391 : vector<1xf32> to vector<1x1x1xf32>
      %393 = vector.extract %392[0, 0, 0] : f32 from vector<1x1x1xf32>
      %c0_295 = arith.constant 0 : index
      %c21_296 = arith.constant 21 : index
      %394 = memref.load %arg10[%c0_295, %c21_296] : memref<1x22xf32, #tpu.memory_space<smem>>
      memref.store %393, %arg10[%c0_295, %c21_296] : memref<1x22xf32, #tpu.memory_space<smem>>
    } else {
    }
    return
  }
  func.func @transform_0(%arg0: i32, %arg1: i32) -> (i32, i32) {
    %c1_i32 = arith.constant 1 : i32
    %0 = arith.muli %arg0, %c1_i32 : i32
    %1 = arith.addi %0, %arg1 : i32
    %c0_i32 = arith.constant 0 : i32
    %2 = arith.minsi %1, %c0_i32 : i32
    %c0_i32_0 = arith.constant 0 : i32
    %c0_i32_1 = arith.constant 0 : i32
    return %2, %c0_i32_0 : i32, i32
  }
  func.func @transform_1(%arg0: i32, %arg1: i32) -> (i32, i32) {
    %c1_i32 = arith.constant 1 : i32
    %0 = arith.muli %arg0, %c1_i32 : i32
    %1 = arith.addi %0, %arg1 : i32
    %c0_i32 = arith.constant 0 : i32
    %2 = arith.minsi %1, %c0_i32 : i32
    %c0_i32_0 = arith.constant 0 : i32
    %c0_i32_1 = arith.constant 0 : i32
    return %2, %c0_i32_0 : i32, i32
  }
  func.func @transform_2(%arg0: i32, %arg1: i32) -> (i32, i32) {
    %c1_i32 = arith.constant 1 : i32
    %0 = arith.muli %arg0, %c1_i32 : i32
    %1 = arith.addi %0, %arg1 : i32
    %c0_i32 = arith.constant 0 : i32
    %2 = arith.minsi %1, %c0_i32 : i32
    %c0_i32_0 = arith.constant 0 : i32
    %c0_i32_1 = arith.constant 0 : i32
    return %2, %c0_i32_0 : i32, i32
  }
  func.func @transform_3(%arg0: i32, %arg1: i32) -> (i32, i32) {
    %c1_i32 = arith.constant 1 : i32
    %0 = arith.muli %arg0, %c1_i32 : i32
    %1 = arith.addi %0, %arg1 : i32
    %c0_i32 = arith.constant 0 : i32
    %2 = arith.minsi %1, %c0_i32 : i32
    %c0_i32_0 = arith.constant 0 : i32
    %c0_i32_1 = arith.constant 0 : i32
    return %2, %c0_i32_0 : i32, i32
  }
  func.func @transform_4(%arg0: i32, %arg1: i32) -> (i32, i32) {
    %c1_i32 = arith.constant 1 : i32
    %0 = arith.muli %arg0, %c1_i32 : i32
    %1 = arith.addi %0, %arg1 : i32
    %c0_i32 = arith.constant 0 : i32
    %2 = arith.minsi %1, %c0_i32 : i32
    %c0_i32_0 = arith.constant 0 : i32
    %c0_i32_1 = arith.constant 0 : i32
    return %2, %c0_i32_0 : i32, i32
  }
  func.func @transform_5(%arg0: i32, %arg1: i32) -> (i32, i32) {
    %c1_i32 = arith.constant 1 : i32
    %0 = arith.muli %arg0, %c1_i32 : i32
    %1 = arith.addi %0, %arg1 : i32
    %c0_i32 = arith.constant 0 : i32
    %2 = arith.minsi %1, %c0_i32 : i32
    %c0_i32_0 = arith.constant 0 : i32
    %c0_i32_1 = arith.constant 0 : i32
    return %2, %c0_i32_0 : i32, i32
  }
  func.func @transform_6(%arg0: i32, %arg1: i32) -> (i32, i32) {
    %c1_i32 = arith.constant 1 : i32
    %0 = arith.muli %arg0, %c1_i32 : i32
    %1 = arith.addi %0, %arg1 : i32
    %c0_i32 = arith.constant 0 : i32
    %2 = arith.minsi %1, %c0_i32 : i32
    %c0_i32_0 = arith.constant 0 : i32
    %c0_i32_1 = arith.constant 0 : i32
    return %2, %c0_i32_0 : i32, i32
  }
  func.func @transform_7(%arg0: i32, %arg1: i32) -> (i32, i32) {
    %c1_i32 = arith.constant 1 : i32
    %0 = arith.muli %arg0, %c1_i32 : i32
    %1 = arith.addi %0, %arg1 : i32
    %c0_i32 = arith.constant 0 : i32
    %2 = arith.minsi %1, %c0_i32 : i32
    %c0_i32_0 = arith.constant 0 : i32
    %c0_i32_1 = arith.constant 0 : i32
    return %2, %c0_i32_0 : i32, i32
  }
  func.func @transform_8(%arg0: i32, %arg1: i32) -> (i32, i32) {
    %c0_i32 = arith.constant 0 : i32
    %c0_i32_0 = arith.constant 0 : i32
    return %arg0, %c0_i32 : i32, i32
  }
}

</mosaic_0001>

<llo_original>
// kernel: tpu_custom_call.1
$region0: #{tpu_custom_call.1}
  #allocation0 [shape = 'u32[]', space=smem, size = 0x4, offset = 0x4, fixed_abs, tag = 'smem constant byte address 0x4 - core index']
  #allocation1 [shape = 'u32[144,128]{1,0:T(1,128)}', space=vmem, size = 0x12000, scoped, tag = 'internal scratch']
  #allocation2 [shape = 'f32[22,1,128]{2,1,0:T(1,128)}', space=vmem, size = 0x2c00, scoped, tag = 'scratch operand']
  %s0 = inlined_call_operand.hbm [shape: f32[4,128], index: 0, kind: input, shape index: {}]
  %s1 = inlined_call_operand.hbm [shape: f32[4,128], index: 1, kind: input, shape index: {}]
  %s2 = inlined_call_operand.hbm [shape: f32[4,128], index: 2, kind: input, shape index: {}]
  %s3 = inlined_call_operand.vmem [shape: f32[4,128], index: 3, kind: input, shape index: {}]
  %s4 = inlined_call_operand.hbm [shape: f32[4,128], index: 4, kind: input, shape index: {}]
  %s5 = inlined_call_operand.vmem [shape: f32[4,128], index: 5, kind: input, shape index: {}]
  %s6 = inlined_call_operand.hbm [shape: f32[4,128], index: 6, kind: input, shape index: {}]
  %s7 = inlined_call_operand.vmem [shape: f32[4,128], index: 7, kind: input, shape index: {}]
  %s8 = inlined_call_operand.hbm [shape: f32[1,22], index: 8, kind: output, shape index: {}]
  %s9 = sld [smem:[#allocation0]]
  $region70: #{tpu_custom_call.1} parent=0
    _
  %s11 = ssub.s32 1, %s9
  %s12 = scalar_select 0, %s11, %s9
  $region1: #{tpu_custom_call.1} parent=0
    #allocation3 [shape = 'u8[2048]{0}', space=vmem, size = 0x800, scoped, tag = 'input window, operand 0, single buffered']
    #allocation4 [shape = 's32[1]{0}', space=sflag, size = 0x4, scoped, tag = 'scoped memory for tpu_custom_call.1']
    #allocation5 [shape = 's32[1]{0}', space=sflag, size = 0x4, scoped, tag = 'scoped memory for tpu_custom_call.1']
    #allocation6 [shape = 'u8[2048]{0}', space=vmem, size = 0x800, scoped, tag = 'input window, operand 1, single buffered']
    #allocation7 [shape = 's32[1]{0}', space=sflag, size = 0x4, scoped, tag = 'scoped memory for tpu_custom_call.1']
    #allocation8 [shape = 'u8[2048]{0}', space=vmem, size = 0x800, scoped, tag = 'input window, operand 2, single buffered']
    #allocation9 [shape = 'u8[2048]{0}', space=vmem, size = 0x800, scoped, tag = 'input window, operand 4, single buffered']
    #allocation10 [shape = 's32[1]{0}', space=sflag, size = 0x4, scoped, tag = 'scoped memory for tpu_custom_call.1']
    #allocation11 [shape = 'u8[2048]{0}', space=vmem, size = 0x800, scoped, tag = 'input window, operand 6, single buffered']
    #allocation12 [shape = 'u8[512]{0}', space=smem, size = 0x200, scoped, tag = 'output window, operand 0, single buffered']
    %13 = vsyncpa [#allocation4], 0
    %14 = vsyncpa [#allocation7], 0
    %15 = vsyncpa [#allocation10], 0
    %16 = vsyncpa [#allocation5], 0
    // Predicated region
    $region2: #{tpu_custom_call.1} parent=1 // pred_check
      _
    $region3: #{tpu_custom_call.1} parent=1 // pred_check_branch
      %18 = sbr.rel (0) target = $region5
    $region4: #{tpu_custom_call.1} parent=1 // pred_region
      %s19 = sadd.s32 0, 0
      %p20 = scmp.lt.s32.totalorder %s19, 0
      %s21 = scalar_select %p20, %s19, 0
      %s23 = ssub.s32 64, 64
      %24 = vsyncadd [#allocation4], %s23
      %s25 = smul.addr %s21, 64
      %s26 = scalar_lea.hbm %s0, %s25
      %s28 = sshll.u32 [#allocation3], 4
      %s29 = int_to_ptr.vmem [resolvable:$true] %s28
      %31 = dma.hbm_to_vmem [thread:$0]  %s26, 64, %s29, [#allocation4]
    $region5: #{tpu_custom_call.1} parent=1 // pred_fallthru
      _
    // Predicated region
    $region6: #{tpu_custom_call.1} parent=1 // pred_check
      _
    $region7: #{tpu_custom_call.1} parent=1 // pred_check_branch
      %33 = sbr.rel (0) target = $region9
    $region8: #{tpu_custom_call.1} parent=1 // pred_region
      %s34 = sadd.s32 0, 0
      %p35 = scmp.lt.s32.totalorder %s34, 0
      %s36 = scalar_select %p35, %s34, 0
      %s38 = ssub.s32 64, 64
      %39 = vsyncadd [#allocation7], %s38
      %s40 = smul.addr %s36, 64
      %s41 = scalar_lea.hbm %s1, %s40
      %s43 = sshll.u32 [#allocation6], 4
      %s44 = int_to_ptr.vmem [resolvable:$true] %s43
      %46 = dma.hbm_to_vmem [thread:$0]  %s41, 64, %s44, [#allocation7]
    $region9: #{tpu_custom_call.1} parent=1 // pred_fallthru
      _
    // Predicated region
    $region10: #{tpu_custom_call.1} parent=1 // pred_check
      _
    $region11: #{tpu_custom_call.1} parent=1 // pred_check_branch
      %48 = sbr.rel (0) target = $region13
    $region12: #{tpu_custom_call.1} parent=1 // pred_region
      %s49 = sadd.s32 0, 0
      %p50 = scmp.lt.s32.totalorder %s49, 0
      %s51 = scalar_select %p50, %s49, 0
      %s53 = ssub.s32 64, 64
      %54 = vsyncadd [#allocation7], %s53
      %s55 = smul.addr %s51, 64
      %s56 = scalar_lea.hbm %s2, %s55
      %s58 = sshll.u32 [#allocation8], 4
      %s59 = int_to_ptr.vmem [resolvable:$true] %s58
      %61 = dma.hbm_to_vmem [thread:$0]  %s56, 64, %s59, [#allocation7]
    $region13: #{tpu_custom_call.1} parent=1 // pred_fallthru
      _
    // Predicated region
    $region14: #{tpu_custom_call.1} parent=1 // pred_check
      _
    $region15: #{tpu_custom_call.1} parent=1 // pred_check_branch
      %63 = sbr.rel (0) target = $region17
    $region16: #{tpu_custom_call.1} parent=1 // pred_region
      %s64 = sadd.s32 0, 0
      %p65 = scmp.lt.s32.totalorder %s64, 0
      %s66 = scalar_select %p65, %s64, 0
      %p67 = scmp.lt.s32.totalorder %s66, 0
      %s68 = scalar_select %p67, %s66, 0
      %s69 = smul.addr %s68, 4
      %s70 = scalar_lea.vmem %s3, %s69
      %s71 = sadd.s32 0, 0
      %p72 = scmp.lt.s32.totalorder %s71, 0
      %s73 = scalar_select %p72, %s71, 0
    $region17: #{tpu_custom_call.1} parent=1 // pred_fallthru
      _
    // Predicated region
    $region18: #{tpu_custom_call.1} parent=1 // pred_check
      _
    $region19: #{tpu_custom_call.1} parent=1 // pred_check_branch
      %75 = sbr.rel (0) target = $region21
    $region20: #{tpu_custom_call.1} parent=1 // pred_region
      %s76 = sadd.s32 0, 0
      %p77 = scmp.lt.s32.totalorder %s76, 0
      %s78 = scalar_select %p77, %s76, 0
      %s80 = ssub.s32 64, 64
      %81 = vsyncadd [#allocation10], %s80
      %s82 = smul.addr %s78, 64
      %s83 = scalar_lea.hbm %s4, %s82
      %s85 = sshll.u32 [#allocation9], 4
      %s86 = int_to_ptr.vmem [resolvable:$true] %s85
      %88 = dma.hbm_to_vmem [thread:$0]  %s83, 64, %s86, [#allocation10]
    $region21: #{tpu_custom_call.1} parent=1 // pred_fallthru
      _
    // Predicated region
    $region22: #{tpu_custom_call.1} parent=1 // pred_check
      _
    $region23: #{tpu_custom_call.1} parent=1 // pred_check_branch
      %90 = sbr.rel (0) target = $region25
    $region24: #{tpu_custom_call.1} parent=1 // pred_region
      %s91 = sadd.s32 0, 0
      %p92 = scmp.lt.s32.totalorder %s91, 0
      %s93 = scalar_select %p92, %s91, 0
      %p94 = scmp.lt.s32.totalorder %s93, 0
      %s95 = scalar_select %p94, %s93, 0
      %s96 = smul.addr %s95, 4
      %s97 = scalar_lea.vmem %s5, %s96
      %s98 = sadd.s32 0, 0
      %p99 = scmp.lt.s32.totalorder %s98, 0
      %s100 = scalar_select %p99, %s98, 0
    $region25: #{tpu_custom_call.1} parent=1 // pred_fallthru
      _
    // Predicated region
    $region26: #{tpu_custom_call.1} parent=1 // pred_check
      _
    $region27: #{tpu_custom_call.1} parent=1 // pred_check_branch
      %102 = sbr.rel (0) target = $region29
    $region28: #{tpu_custom_call.1} parent=1 // pred_region
      %s103 = sadd.s32 0, 0
      %p104 = scmp.lt.s32.totalorder %s103, 0
      %s105 = scalar_select %p104, %s103, 0
      %s107 = ssub.s32 64, 64
      %108 = vsyncadd [#allocation10], %s107
      %s109 = smul.addr %s105, 64
      %s110 = scalar_lea.hbm %s6, %s109
      %s112 = sshll.u32 [#allocation11], 4
      %s113 = int_to_ptr.vmem [resolvable:$true] %s112
      %115 = dma.hbm_to_vmem [thread:$0]  %s110, 64, %s113, [#allocation10]
    $region29: #{tpu_custom_call.1} parent=1 // pred_fallthru
      _
    // Predicated region
    $region30: #{tpu_custom_call.1} parent=1 // pred_check
      _
    $region31: #{tpu_custom_call.1} parent=1 // pred_check_branch
      %117 = sbr.rel (0) target = $region33
    $region32: #{tpu_custom_call.1} parent=1 // pred_region
      %s118 = sadd.s32 0, 0
      %p119 = scmp.lt.s32.totalorder %s118, 0
      %s120 = scalar_select %p119, %s118, 0
      %p121 = scmp.lt.s32.totalorder %s120, 0
      %s122 = scalar_select %p121, %s120, 0
      %s123 = smul.addr %s122, 4
      %s124 = scalar_lea.vmem %s7, %s123
      %s125 = sadd.s32 0, 0
      %p126 = scmp.lt.s32.totalorder %s125, 0
      %s127 = scalar_select %p126, %s125, 0
    $region33: #{tpu_custom_call.1} parent=1 // pred_fallthru
      _
    // Predicated region
    $region34: #{tpu_custom_call.1} parent=1 // pred_check
      _
    $region35: #{tpu_custom_call.1} parent=1 // pred_check_branch
      %129 = sbr.rel (0) target = $region37
    $region36: #{tpu_custom_call.1} parent=1 // pred_region
      %130 = dma.done [#allocation4], 64
    $region37: #{tpu_custom_call.1} parent=1 // pred_fallthru
      _
    // Predicated region
    $region38: #{tpu_custom_call.1} parent=1 // pred_check
      _
    $region39: #{tpu_custom_call.1} parent=1 // pred_check_branch
      %132 = sbr.rel (0) target = $region41
    $region40: #{tpu_custom_call.1} parent=1 // pred_region
      %133 = dma.done [#allocation7], 64
    $region41: #{tpu_custom_call.1} parent=1 // pred_fallthru
      _
    // Predicated region
    $region42: #{tpu_custom_call.1} parent=1 // pred_check
      _
    $region43: #{tpu_custom_call.1} parent=1 // pred_check_branch
      %135 = sbr.rel (0) target = $region45
    $region44: #{tpu_custom_call.1} parent=1 // pred_region
      %136 = dma.done [#allocation7], 64
    $region45: #{tpu_custom_call.1} parent=1 // pred_fallthru
      _
    // Predicated region
    $region46: #{tpu_custom_call.1} parent=1 // pred_check
      _
    $region47: #{tpu_custom_call.1} parent=1 // pred_check_branch
      %138 = sbr.rel (0) target = $region49
    $region48: #{tpu_custom_call.1} parent=1 // pred_region
      %139 = dma.done [#allocation10], 64
    $region49: #{tpu_custom_call.1} parent=1 // pred_fallthru
      _
    // Predicated region
    $region50: #{tpu_custom_call.1} parent=1 // pred_check
      _
    $region51: #{tpu_custom_call.1} parent=1 // pred_check_branch
      %141 = sbr.rel (0) target = $region53
    $region52: #{tpu_custom_call.1} parent=1 // pred_region
      %142 = dma.done [#allocation10], 64
    $region53: #{tpu_custom_call.1} parent=1 // pred_fallthru
      _
    %s143 = sadd.s32 0, 0
    %p144 = scmp.lt.s32.totalorder %s143, 0
    %s145 = scalar_select %p144, %s143, 0
    %p146 = scmp.lt.s32.totalorder %s145, 0
    %s147 = scalar_select %p146, %s145, 0
    %s148 = smul.addr %s147, 4
    %s149 = scalar_lea.vmem %s3, %s148
    %s150 = sadd.s32 0, 0
    %p151 = scmp.lt.s32.totalorder %s150, 0
    %s152 = scalar_select %p151, %s150, 0
    %p153 = scmp.lt.s32.totalorder %s152, 0
    %s154 = scalar_select %p153, %s152, 0
    %s155 = smul.addr %s154, 4
    %s156 = scalar_lea.vmem %s5, %s155
    %s157 = sadd.s32 0, 0
    %p158 = scmp.lt.s32.totalorder %s157, 0
    %s159 = scalar_select %p158, %s157, 0
    %p160 = scmp.lt.s32.totalorder %s159, 0
    %s161 = scalar_select %p160, %s159, 0
    %s162 = smul.addr %s161, 4
    %s163 = scalar_lea.vmem %s7, %s162
    %s164 = sadd.s32 0, 0
    %p165 = scmp.lt.s32.totalorder %s164, 0
    %s166 = scalar_select %p165, %s164, 0
    %s167 = sadd.s32 0, 0
    %p168 = scmp.lt.s32.totalorder %s167, 0
    %s169 = scalar_select %p168, %s167, 0
    %s170 = sadd.s32 0, 0
    %p171 = scmp.lt.s32.totalorder %s170, 0
    %s172 = scalar_select %p171, %s170, 0
    %s173 = sadd.s32 0, 0
    %p174 = scmp.lt.s32.totalorder %s173, 0
    %s175 = scalar_select %p174, %s173, 0
    %p176 = scmp.lt.s32.totalorder %s175, 0
    %s177 = scalar_select %p176, %s175, 0
    %s178 = smul.addr %s177, 4
    %s179 = scalar_lea.vmem %s3, %s178
    %s180 = sadd.s32 0, 0
    %p181 = scmp.lt.s32.totalorder %s180, 0
    %s182 = scalar_select %p181, %s180, 0
    %s183 = sadd.s32 0, 0
    %p184 = scmp.lt.s32.totalorder %s183, 0
    %s185 = scalar_select %p184, %s183, 0
    %s186 = sadd.s32 0, 0
    %p187 = scmp.lt.s32.totalorder %s186, 0
    %s188 = scalar_select %p187, %s186, 0
    %p189 = scmp.lt.s32.totalorder %s188, 0
    %s190 = scalar_select %p189, %s188, 0
    %s191 = smul.addr %s190, 4
    %s192 = scalar_lea.vmem %s5, %s191
    %s193 = sadd.s32 0, 0
    %p194 = scmp.lt.s32.totalorder %s193, 0
    %s195 = scalar_select %p194, %s193, 0
    %s196 = sadd.s32 0, 0
    %p197 = scmp.lt.s32.totalorder %s196, 0
    %s198 = scalar_select %p197, %s196, 0
    %s199 = sadd.s32 0, 0
    %p200 = scmp.lt.s32.totalorder %s199, 0
    %s201 = scalar_select %p200, %s199, 0
    %p202 = scmp.lt.s32.totalorder %s201, 0
    %s203 = scalar_select %p202, %s201, 0
    %s204 = smul.addr %s203, 4
    %s205 = scalar_lea.vmem %s7, %s204
    %s206 = sadd.s32 0, 0
    %p207 = scmp.lt.s32.totalorder %s206, 0
    %s208 = scalar_select %p207, %s206, 0
    %p209 = scmp.eq.s32.totalorder 0, 0
    // Predicated region
    $region54: #{tpu_custom_call.1} parent=1 // pred_check
      %p210 = pneg %p209
    $region55: #{tpu_custom_call.1} parent=1 // pred_check_branch
      %212 = sbr.rel (%p210) target = $region57
    $region56: #{tpu_custom_call.1} parent=1 // pred_region
      %213 = vst [vmem:[#allocation2] sm:$0x1] 0.0
      %214 = vst [vmem:[#allocation2 + $0x1] sm:$0x1] 0.0
      %215 = vst [vmem:[#allocation2 + $0x2] sm:$0x1] 0.0
      %216 = vst [vmem:[#allocation2 + $0x3] sm:$0x1] 0.0
      %217 = vst [vmem:[#allocation2 + $0x4] sm:$0x1] 0.0
      %218 = vst [vmem:[#allocation2 + $0x5] sm:$0x1] 0.0
      %219 = vst [vmem:[#allocation2 + $0x6] sm:$0x1] 0.0
      %220 = vst [vmem:[#allocation2 + $0x7] sm:$0x1] 0.0
      %221 = vst [vmem:[#allocation2 + $0x8] sm:$0x1] 0.0
      %222 = vst [vmem:[#allocation2 + $0x9] sm:$0x1] 0.0
      %223 = vst [vmem:[#allocation2 + $0xa] sm:$0x1] 0.0
      %224 = vst [vmem:[#allocation2 + $0xb] sm:$0x1] 0.0
      %225 = vst [vmem:[#allocation2 + $0xc] sm:$0x1] 0.0
      %226 = vst [vmem:[#allocation2 + $0xd] sm:$0x1] 0.0
      %227 = vst [vmem:[#allocation2 + $0xe] sm:$0x1] 0.0
      %228 = vst [vmem:[#allocation2 + $0xf] sm:$0x1] 0.0
      %229 = vst [vmem:[#allocation2 + $0x10] sm:$0x1] 0.0
      %230 = vst [vmem:[#allocation2 + $0x11] sm:$0x1] 0.0
      %231 = vst [vmem:[#allocation2 + $0x12] sm:$0x1] 0.0
      %232 = vst [vmem:[#allocation2 + $0x13] sm:$0x1] 0.0
      %233 = vst [vmem:[#allocation2 + $0x14] sm:$0x1] 0.0
      %234 = vst [vmem:[#allocation2 + $0x15] sm:$0x1] 0.0
    $region57: #{tpu_custom_call.1} parent=1 // pred_fallthru
      _
    %v235 = vld [vmem:[%s205] sm:$0xf]
    %vm236 = vcmp.gt.f32.partialorder %v235, 0.5
    %v237 = vld [vmem:[#allocation2] sm:$0x1]
    %vm238 = vcmask 1043456
    %v239 = vsel %vm238, %v235, 0.0
    %v240 = vrot.slane %v239, 4
    %v241 = vadd.f32 %v239, %v240
    %v242 = vrot.slane %v241, 2
    %v243 = vadd.f32 %v241, %v242
    %v244 = vrot.slane %v243, 1
    %v245 = vadd.f32 %v243, %v244
    %v246 = vadd.f32 %v237, %v245
    %247 = vst [vmem:[#allocation2] sm:$0x1] %v246
    %v248 = vld [vmem:[#allocation3] sm:$0xf]
    %v249 = vsub.f32 1.0, %v248
    %v250 = vsel %vm236, %v248, %v249
    %s251 = scalar_lea.vmem [#allocation2], 1
    %v252 = vld [vmem:[%s251] sm:$0x1]
    %v253 = vlog2.pop %v250
    %v254 = vmul.f32 %v253, 0.6931472
    %v255 = vmax.f32 %v254, -100.0
    %v256 = vsel %vm238, %v255, 0.0
    %v257 = vrot.slane %v256, 4
    %v258 = vadd.f32 %v256, %v257
    %v259 = vrot.slane %v258, 2
    %v260 = vadd.f32 %v258, %v259
    %v261 = vrot.slane %v260, 1
    %v262 = vadd.f32 %v260, %v261
    %v263 = vadd.f32 %v252, %v262
    %264 = vst [vmem:[%s251] sm:$0x1] %v263
    %s265 = scalar_lea.vmem [#allocation2], 2
    %v266 = vld [vmem:[%s265] sm:$0x1]
    %v267 = vmul.f32 %v248, %v235
    %v268 = vsel %vm238, %v267, 0.0
    %v269 = vrot.slane %v268, 4
    %v270 = vadd.f32 %v268, %v269
    %v271 = vrot.slane %v270, 2
    %v272 = vadd.f32 %v270, %v271
    %v273 = vrot.slane %v272, 1
    %v274 = vadd.f32 %v272, %v273
    %v275 = vadd.f32 %v266, %v274
    %276 = vst [vmem:[%s265] sm:$0x1] %v275
    %s277 = scalar_lea.vmem [#allocation2], 3
    %v278 = vld [vmem:[%s277] sm:$0x1]
    %v279 = vsel %vm238, %v248, 0.0
    %v280 = vrot.slane %v279, 4
    %v281 = vadd.f32 %v279, %v280
    %v282 = vrot.slane %v281, 2
    %v283 = vadd.f32 %v281, %v282
    %v284 = vrot.slane %v283, 1
    %v285 = vadd.f32 %v283, %v284
    %v286 = vadd.f32 %v278, %v285
    %287 = vst [vmem:[%s277] sm:$0x1] %v286
    %v288 = vld [vmem:[#allocation6] sm:$0xf]
    %v289 = vsub.f32 1.0, %v288
    %v290 = vsel %vm236, %v288, %v289
    %s291 = scalar_lea.vmem [#allocation2], 4
    %v292 = vld [vmem:[%s291] sm:$0x1]
    %v293 = vlog2.pop %v290
    %v294 = vmul.f32 %v293, 0.6931472
    %v295 = vmax.f32 %v294, -100.0
    %v296 = vsel %vm238, %v295, 0.0
    %v297 = vrot.slane %v296, 4
    %v298 = vadd.f32 %v296, %v297
    %v299 = vrot.slane %v298, 2
    %v300 = vadd.f32 %v298, %v299
    %v301 = vrot.slane %v300, 1
    %v302 = vadd.f32 %v300, %v301
    %v303 = vadd.f32 %v292, %v302
    %304 = vst [vmem:[%s291] sm:$0x1] %v303
    %s305 = scalar_lea.vmem [#allocation2], 5
    %v306 = vld [vmem:[%s305] sm:$0x1]
    %v307 = vmul.f32 %v288, %v235
    %v308 = vsel %vm238, %v307, 0.0
    %v309 = vrot.slane %v308, 4
    %v310 = vadd.f32 %v308, %v309
    %v311 = vrot.slane %v310, 2
    %v312 = vadd.f32 %v310, %v311
    %v313 = vrot.slane %v312, 1
    %v314 = vadd.f32 %v312, %v313
    %v315 = vadd.f32 %v306, %v314
    %316 = vst [vmem:[%s305] sm:$0x1] %v315
    %s317 = scalar_lea.vmem [#allocation2], 6
    %v318 = vld [vmem:[%s317] sm:$0x1]
    %v319 = vsel %vm238, %v288, 0.0
    %v320 = vrot.slane %v319, 4
    %v321 = vadd.f32 %v319, %v320
    %v322 = vrot.slane %v321, 2
    %v323 = vadd.f32 %v321, %v322
    %v324 = vrot.slane %v323, 1
    %v325 = vadd.f32 %v323, %v324
    %v326 = vadd.f32 %v318, %v325
    %327 = vst [vmem:[%s317] sm:$0x1] %v326
    %v328 = vld [vmem:[#allocation8] sm:$0xf]
    %v329 = vsub.f32 1.0, %v328
    %v330 = vsel %vm236, %v328, %v329
    %s331 = scalar_lea.vmem [#allocation2], 7
    %v332 = vld [vmem:[%s331] sm:$0x1]
    %v333 = vlog2.pop %v330
    %v334 = vmul.f32 %v333, 0.6931472
    %v335 = vmax.f32 %v334, -100.0
    %v336 = vsel %vm238, %v335, 0.0
    %v337 = vrot.slane %v336, 4
    %v338 = vadd.f32 %v336, %v337
    %v339 = vrot.slane %v338, 2
    %v340 = vadd.f32 %v338, %v339
    %v341 = vrot.slane %v340, 1
    %v342 = vadd.f32 %v340, %v341
    %v343 = vadd.f32 %v332, %v342
    %344 = vst [vmem:[%s331] sm:$0x1] %v343
    %s345 = scalar_lea.vmem [#allocation2], 8
    %v346 = vld [vmem:[%s345] sm:$0x1]
    %v347 = vmul.f32 %v328, %v235
    %v348 = vsel %vm238, %v347, 0.0
    %v349 = vrot.slane %v348, 4
    %v350 = vadd.f32 %v348, %v349
    %v351 = vrot.slane %v350, 2
    %v352 = vadd.f32 %v350, %v351
    %v353 = vrot.slane %v352, 1
    %v354 = vadd.f32 %v352, %v353
    %v355 = vadd.f32 %v346, %v354
    %356 = vst [vmem:[%s345] sm:$0x1] %v355
    %s357 = scalar_lea.vmem [#allocation2], 9
    %v358 = vld [vmem:[%s357] sm:$0x1]
    %v359 = vsel %vm238, %v328, 0.0
    %v360 = vrot.slane %v359, 4
    %v361 = vadd.f32 %v359, %v360
    %v362 = vrot.slane %v361, 2
    %v363 = vadd.f32 %v361, %v362
    %v364 = vrot.slane %v363, 1
    %v365 = vadd.f32 %v363, %v364
    %v366 = vadd.f32 %v358, %v365
    %367 = vst [vmem:[%s357] sm:$0x1] %v366
    %v368 = vld [vmem:[%s179] sm:$0xf]
    %v369 = vsub.f32 1.0, %v368
    %v370 = vsel %vm236, %v368, %v369
    %s371 = scalar_lea.vmem [#allocation2], 10
    %v372 = vld [vmem:[%s371] sm:$0x1]
    %v373 = vlog2.pop %v370
    %v374 = vmul.f32 %v373, 0.6931472
    %v375 = vmax.f32 %v374, -100.0
    %v376 = vsel %vm238, %v375, 0.0
    %v377 = vrot.slane %v376, 4
    %v378 = vadd.f32 %v376, %v377
    %v379 = vrot.slane %v378, 2
    %v380 = vadd.f32 %v378, %v379
    %v381 = vrot.slane %v380, 1
    %v382 = vadd.f32 %v380, %v381
    %v383 = vadd.f32 %v372, %v382
    %384 = vst [vmem:[%s371] sm:$0x1] %v383
    %s385 = scalar_lea.vmem [#allocation2], 11
    %v386 = vld [vmem:[%s385] sm:$0x1]
    %v387 = vmul.f32 %v368, %v235
    %v388 = vsel %vm238, %v387, 0.0
    %v389 = vrot.slane %v388, 4
    %v390 = vadd.f32 %v388, %v389
    %v391 = vrot.slane %v390, 2
    %v392 = vadd.f32 %v390, %v391
    %v393 = vrot.slane %v392, 1
    %v394 = vadd.f32 %v392, %v393
    %v395 = vadd.f32 %v386, %v394
    %396 = vst [vmem:[%s385] sm:$0x1] %v395
    %s397 = scalar_lea.vmem [#allocation2], 12
    %v398 = vld [vmem:[%s397] sm:$0x1]
    %v399 = vsel %vm238, %v368, 0.0
    %v400 = vrot.slane %v399, 4
    %v401 = vadd.f32 %v399, %v400
    %v402 = vrot.slane %v401, 2
    %v403 = vadd.f32 %v401, %v402
    %v404 = vrot.slane %v403, 1
    %v405 = vadd.f32 %v403, %v404
    %v406 = vadd.f32 %v398, %v405
    %407 = vst [vmem:[%s397] sm:$0x1] %v406
    %v408 = vld [vmem:[#allocation9] sm:$0xf]
    %v409 = vsub.f32 1.0, %v408
    %v410 = vsel %vm236, %v408, %v409
    %s411 = scalar_lea.vmem [#allocation2], 13
    %v412 = vld [vmem:[%s411] sm:$0x1]
    %v413 = vlog2.pop %v410
    %v414 = vmul.f32 %v413, 0.6931472
    %v415 = vmax.f32 %v414, -100.0
    %v416 = vsel %vm238, %v415, 0.0
    %v417 = vrot.slane %v416, 4
    %v418 = vadd.f32 %v416, %v417
    %v419 = vrot.slane %v418, 2
    %v420 = vadd.f32 %v418, %v419
    %v421 = vrot.slane %v420, 1
    %v422 = vadd.f32 %v420, %v421
    %v423 = vadd.f32 %v412, %v422
    %424 = vst [vmem:[%s411] sm:$0x1] %v423
    %s425 = scalar_lea.vmem [#allocation2], 14
    %v426 = vld [vmem:[%s425] sm:$0x1]
    %v427 = vmul.f32 %v408, %v235
    %v428 = vsel %vm238, %v427, 0.0
    %v429 = vrot.slane %v428, 4
    %v430 = vadd.f32 %v428, %v429
    %v431 = vrot.slane %v430, 2
    %v432 = vadd.f32 %v430, %v431
    %v433 = vrot.slane %v432, 1
    %v434 = vadd.f32 %v432, %v433
    %v435 = vadd.f32 %v426, %v434
    %436 = vst [vmem:[%s425] sm:$0x1] %v435
    %s437 = scalar_lea.vmem [#allocation2], 15
    %v438 = vld [vmem:[%s437] sm:$0x1]
    %v439 = vsel %vm238, %v408, 0.0
    %v440 = vrot.slane %v439, 4
    %v441 = vadd.f32 %v439, %v440
    %v442 = vrot.slane %v441, 2
    %v443 = vadd.f32 %v441, %v442
    %v444 = vrot.slane %v443, 1
    %v445 = vadd.f32 %v443, %v444
    %v446 = vadd.f32 %v438, %v445
    %447 = vst [vmem:[%s437] sm:$0x1] %v446
    %v448 = vld [vmem:[%s192] sm:$0xf]
    %v449 = vsub.f32 1.0, %v448
    %v450 = vsel %vm236, %v448, %v449
    %s451 = scalar_lea.vmem [#allocation2], 16
    %v452 = vld [vmem:[%s451] sm:$0x1]
    %v453 = vlog2.pop %v450
    %v454 = vmul.f32 %v453, 0.6931472
    %v455 = vmax.f32 %v454, -100.0
    %v456 = vsel %vm238, %v455, 0.0
    %v457 = vrot.slane %v456, 4
    %v458 = vadd.f32 %v456, %v457
    %v459 = vrot.slane %v458, 2
    %v460 = vadd.f32 %v458, %v459
    %v461 = vrot.slane %v460, 1
    %v462 = vadd.f32 %v460, %v461
    %v463 = vadd.f32 %v452, %v462
    %464 = vst [vmem:[%s451] sm:$0x1] %v463
    %s465 = scalar_lea.vmem [#allocation2], 17
    %v466 = vld [vmem:[%s465] sm:$0x1]
    %v467 = vmul.f32 %v448, %v235
    %v468 = vsel %vm238, %v467, 0.0
    %v469 = vrot.slane %v468, 4
    %v470 = vadd.f32 %v468, %v469
    %v471 = vrot.slane %v470, 2
    %v472 = vadd.f32 %v470, %v471
    %v473 = vrot.slane %v472, 1
    %v474 = vadd.f32 %v472, %v473
    %v475 = vadd.f32 %v466, %v474
    %476 = vst [vmem:[%s465] sm:$0x1] %v475
    %s477 = scalar_lea.vmem [#allocation2], 18
    %v478 = vld [vmem:[%s477] sm:$0x1]
    %v479 = vsel %vm238, %v448, 0.0
    %v480 = vrot.slane %v479, 4
    %v481 = vadd.f32 %v479, %v480
    %v482 = vrot.slane %v481, 2
    %v483 = vadd.f32 %v481, %v482
    %v484 = vrot.slane %v483, 1
    %v485 = vadd.f32 %v483, %v484
    %v486 = vadd.f32 %v478, %v485
    %487 = vst [vmem:[%s477] sm:$0x1] %v486
    %v488 = vld [vmem:[#allocation11] sm:$0xf]
    %v489 = vsub.f32 1.0, %v488
    %v490 = vsel %vm236, %v488, %v489
    %s491 = scalar_lea.vmem [#allocation2], 19
    %v492 = vld [vmem:[%s491] sm:$0x1]
    %v493 = vlog2.pop %v490
    %v494 = vmul.f32 %v493, 0.6931472
    %v495 = vmax.f32 %v494, -100.0
    %v496 = vsel %vm238, %v495, 0.0
    %v497 = vrot.slane %v496, 4
    %v498 = vadd.f32 %v496, %v497
    %v499 = vrot.slane %v498, 2
    %v500 = vadd.f32 %v498, %v499
    %v501 = vrot.slane %v500, 1
    %v502 = vadd.f32 %v500, %v501
    %v503 = vadd.f32 %v492, %v502
    %504 = vst [vmem:[%s491] sm:$0x1] %v503
    %s505 = scalar_lea.vmem [#allocation2], 20
    %v506 = vld [vmem:[%s505] sm:$0x1]
    %v507 = vmul.f32 %v488, %v235
    %v508 = vsel %vm238, %v507, 0.0
    %v509 = vrot.slane %v508, 4
    %v510 = vadd.f32 %v508, %v509
    %v511 = vrot.slane %v510, 2
    %v512 = vadd.f32 %v510, %v511
    %v513 = vrot.slane %v512, 1
    %v514 = vadd.f32 %v512, %v513
    %v515 = vadd.f32 %v506, %v514
    %516 = vst [vmem:[%s505] sm:$0x1] %v515
    %s517 = scalar_lea.vmem [#allocation2], 21
    %v518 = vld [vmem:[%s517] sm:$0x1]
    %v519 = vsel %vm238, %v488, 0.0
    %v520 = vrot.slane %v519, 4
    %v521 = vadd.f32 %v519, %v520
    %v522 = vrot.slane %v521, 2
    %v523 = vadd.f32 %v521, %v522
    %v524 = vrot.slane %v523, 1
    %v525 = vadd.f32 %v523, %v524
    %v526 = vadd.f32 %v518, %v525
    %527 = vst [vmem:[%s517] sm:$0x1] %v526
    // Predicated region
    $region58: #{tpu_custom_call.1} parent=1 // pred_check
      %p528 = pneg %p209
    $region59: #{tpu_custom_call.1} parent=1 // pred_check_branch
      %530 = sbr.rel (%p528) target = $region61
    $region60: #{tpu_custom_call.1} parent=1 // pred_region
      %v531 = vld [vmem:[#allocation2] sm:$0x1]
      %vm532 = vcmask 1040384
      %v533 = vsel %vm532, %v531, 0.0
      %534 = vadd.xlane.f32.xlu0 %v533
      %v535 = vpop.xlane.xlu0 %534
      %v536 = vrot.slane %v535, 4
      %v537 = vadd.f32 %v535, %v536
      %v538 = vrot.slane %v537, 2
      %v539 = vadd.f32 %v537, %v538
      %v540 = vrot.slane %v539, 1
      %v541 = vadd.f32 %v539, %v540
      %s542 = vtos %v541
      %s543 = scalar_lea.smem [#allocation12], 0
      %544 = sst [smem:[%s543]] %s542
      %v545 = vld [vmem:[%s251] sm:$0x1]
      %v546 = vsel %vm532, %v545, 0.0
      %547 = vadd.xlane.f32.xlu0 %v546
      %v548 = vpop.xlane.xlu0 %547
      %v549 = vrot.slane %v548, 4
      %v550 = vadd.f32 %v548, %v549
      %v551 = vrot.slane %v550, 2
      %v552 = vadd.f32 %v550, %v551
      %v553 = vrot.slane %v552, 1
      %v554 = vadd.f32 %v552, %v553
      %s555 = vtos %v554
      %s556 = scalar_lea.smem [#allocation12], 1
      %557 = sst [smem:[%s556]] %s555
      %v558 = vld [vmem:[%s265] sm:$0x1]
      %v559 = vsel %vm532, %v558, 0.0
      %560 = vadd.xlane.f32.xlu0 %v559
      %v561 = vpop.xlane.xlu0 %560
      %v562 = vrot.slane %v561, 4
      %v563 = vadd.f32 %v561, %v562
      %v564 = vrot.slane %v563, 2
      %v565 = vadd.f32 %v563, %v564
      %v566 = vrot.slane %v565, 1
      %v567 = vadd.f32 %v565, %v566
      %s568 = vtos %v567
      %s569 = scalar_lea.smem [#allocation12], 2
      %570 = sst [smem:[%s569]] %s568
      %v571 = vld [vmem:[%s277] sm:$0x1]
      %v572 = vsel %vm532, %v571, 0.0
      %573 = vadd.xlane.f32.xlu0 %v572
      %v574 = vpop.xlane.xlu0 %573
      %v575 = vrot.slane %v574, 4
      %v576 = vadd.f32 %v574, %v575
      %v577 = vrot.slane %v576, 2
      %v578 = vadd.f32 %v576, %v577
      %v579 = vrot.slane %v578, 1
      %v580 = vadd.f32 %v578, %v579
      %s581 = vtos %v580
      %s582 = scalar_lea.smem [#allocation12], 3
      %583 = sst [smem:[%s582]] %s581
      %v584 = vld [vmem:[%s291] sm:$0x1]
      %v585 = vsel %vm532, %v584, 0.0
      %586 = vadd.xlane.f32.xlu0 %v585
      %v587 = vpop.xlane.xlu0 %586
      %v588 = vrot.slane %v587, 4
      %v589 = vadd.f32 %v587, %v588
      %v590 = vrot.slane %v589, 2
      %v591 = vadd.f32 %v589, %v590
      %v592 = vrot.slane %v591, 1
      %v593 = vadd.f32 %v591, %v592
      %s594 = vtos %v593
      %s595 = scalar_lea.smem [#allocation12], 4
      %596 = sst [smem:[%s595]] %s594
      %v597 = vld [vmem:[%s305] sm:$0x1]
      %v598 = vsel %vm532, %v597, 0.0
      %599 = vadd.xlane.f32.xlu0 %v598
      %v600 = vpop.xlane.xlu0 %599
      %v601 = vrot.slane %v600, 4
      %v602 = vadd.f32 %v600, %v601
      %v603 = vrot.slane %v602, 2
      %v604 = vadd.f32 %v602, %v603
      %v605 = vrot.slane %v604, 1
      %v606 = vadd.f32 %v604, %v605
      %s607 = vtos %v606
      %s608 = scalar_lea.smem [#allocation12], 5
      %609 = sst [smem:[%s608]] %s607
      %v610 = vld [vmem:[%s317] sm:$0x1]
      %v611 = vsel %vm532, %v610, 0.0
      %612 = vadd.xlane.f32.xlu0 %v611
      %v613 = vpop.xlane.xlu0 %612
      %v614 = vrot.slane %v613, 4
      %v615 = vadd.f32 %v613, %v614
      %v616 = vrot.slane %v615, 2
      %v617 = vadd.f32 %v615, %v616
      %v618 = vrot.slane %v617, 1
      %v619 = vadd.f32 %v617, %v618
      %s620 = vtos %v619
      %s621 = scalar_lea.smem [#allocation12], 6
      %622 = sst [smem:[%s621]] %s620
      %v623 = vld [vmem:[%s331] sm:$0x1]
      %v624 = vsel %vm532, %v623, 0.0
      %625 = vadd.xlane.f32.xlu0 %v624
      %v626 = vpop.xlane.xlu0 %625
      %v627 = vrot.slane %v626, 4
      %v628 = vadd.f32 %v626, %v627
      %v629 = vrot.slane %v628, 2
      %v630 = vadd.f32 %v628, %v629
      %v631 = vrot.slane %v630, 1
      %v632 = vadd.f32 %v630, %v631
      %s633 = vtos %v632
      %s634 = scalar_lea.smem [#allocation12], 7
      %635 = sst [smem:[%s634]] %s633
      %v636 = vld [vmem:[%s345] sm:$0x1]
      %v637 = vsel %vm532, %v636, 0.0
      %638 = vadd.xlane.f32.xlu0 %v637
      %v639 = vpop.xlane.xlu0 %638
      %v640 = vrot.slane %v639, 4
      %v641 = vadd.f32 %v639, %v640
      %v642 = vrot.slane %v641, 2
      %v643 = vadd.f32 %v641, %v642
      %v644 = vrot.slane %v643, 1
      %v645 = vadd.f32 %v643, %v644
      %s646 = vtos %v645
      %s647 = scalar_lea.smem [#allocation12], 8
      %648 = sst [smem:[%s647]] %s646
      %v649 = vld [vmem:[%s357] sm:$0x1]
      %v650 = vsel %vm532, %v649, 0.0
      %651 = vadd.xlane.f32.xlu0 %v650
      %v652 = vpop.xlane.xlu0 %651
      %v653 = vrot.slane %v652, 4
      %v654 = vadd.f32 %v652, %v653
      %v655 = vrot.slane %v654, 2
      %v656 = vadd.f32 %v654, %v655
      %v657 = vrot.slane %v656, 1
      %v658 = vadd.f32 %v656, %v657
      %s659 = vtos %v658
      %s660 = scalar_lea.smem [#allocation12], 9
      %661 = sst [smem:[%s660]] %s659
      %v662 = vld [vmem:[%s371] sm:$0x1]
      %v663 = vsel %vm532, %v662, 0.0
      %664 = vadd.xlane.f32.xlu0 %v663
      %v665 = vpop.xlane.xlu0 %664
      %v666 = vrot.slane %v665, 4
      %v667 = vadd.f32 %v665, %v666
      %v668 = vrot.slane %v667, 2
      %v669 = vadd.f32 %v667, %v668
      %v670 = vrot.slane %v669, 1
      %v671 = vadd.f32 %v669, %v670
      %s672 = vtos %v671
      %s673 = scalar_lea.smem [#allocation12], 10
      %674 = sst [smem:[%s673]] %s672
      %v675 = vld [vmem:[%s385] sm:$0x1]
      %v676 = vsel %vm532, %v675, 0.0
      %677 = vadd.xlane.f32.xlu0 %v676
      %v678 = vpop.xlane.xlu0 %677
      %v679 = vrot.slane %v678, 4
      %v680 = vadd.f32 %v678, %v679
      %v681 = vrot.slane %v680, 2
      %v682 = vadd.f32 %v680, %v681
      %v683 = vrot.slane %v682, 1
      %v684 = vadd.f32 %v682, %v683
      %s685 = vtos %v684
      %s686 = scalar_lea.smem [#allocation12], 11
      %687 = sst [smem:[%s686]] %s685
      %v688 = vld [vmem:[%s397] sm:$0x1]
      %v689 = vsel %vm532, %v688, 0.0
      %690 = vadd.xlane.f32.xlu0 %v689
      %v691 = vpop.xlane.xlu0 %690
      %v692 = vrot.slane %v691, 4
      %v693 = vadd.f32 %v691, %v692
      %v694 = vrot.slane %v693, 2
      %v695 = vadd.f32 %v693, %v694
      %v696 = vrot.slane %v695, 1
      %v697 = vadd.f32 %v695, %v696
      %s698 = vtos %v697
      %s699 = scalar_lea.smem [#allocation12], 12
      %700 = sst [smem:[%s699]] %s698
      %v701 = vld [vmem:[%s411] sm:$0x1]
      %v702 = vsel %vm532, %v701, 0.0
      %703 = vadd.xlane.f32.xlu0 %v702
      %v704 = vpop.xlane.xlu0 %703
      %v705 = vrot.slane %v704, 4
      %v706 = vadd.f32 %v704, %v705
      %v707 = vrot.slane %v706, 2
      %v708 = vadd.f32 %v706, %v707
      %v709 = vrot.slane %v708, 1
      %v710 = vadd.f32 %v708, %v709
      %s711 = vtos %v710
      %s712 = scalar_lea.smem [#allocation12], 13
      %713 = sst [smem:[%s712]] %s711
      %v714 = vld [vmem:[%s425] sm:$0x1]
      %v715 = vsel %vm532, %v714, 0.0
      %716 = vadd.xlane.f32.xlu0 %v715
      %v717 = vpop.xlane.xlu0 %716
      %v718 = vrot.slane %v717, 4
      %v719 = vadd.f32 %v717, %v718
      %v720 = vrot.slane %v719, 2
      %v721 = vadd.f32 %v719, %v720
      %v722 = vrot.slane %v721, 1
      %v723 = vadd.f32 %v721, %v722
      %s724 = vtos %v723
      %s725 = scalar_lea.smem [#allocation12], 14
      %726 = sst [smem:[%s725]] %s724
      %v727 = vld [vmem:[%s437] sm:$0x1]
      %v728 = vsel %vm532, %v727, 0.0
      %729 = vadd.xlane.f32.xlu0 %v728
      %v730 = vpop.xlane.xlu0 %729
      %v731 = vrot.slane %v730, 4
      %v732 = vadd.f32 %v730, %v731
      %v733 = vrot.slane %v732, 2
      %v734 = vadd.f32 %v732, %v733
      %v735 = vrot.slane %v734, 1
      %v736 = vadd.f32 %v734, %v735
      %s737 = vtos %v736
      %s738 = scalar_lea.smem [#allocation12], 15
      %739 = sst [smem:[%s738]] %s737
      %v740 = vld [vmem:[%s451] sm:$0x1]
      %v741 = vsel %vm532, %v740, 0.0
      %742 = vadd.xlane.f32.xlu0 %v741
      %v743 = vpop.xlane.xlu0 %742
      %v744 = vrot.slane %v743, 4
      %v745 = vadd.f32 %v743, %v744
      %v746 = vrot.slane %v745, 2
      %v747 = vadd.f32 %v745, %v746
      %v748 = vrot.slane %v747, 1
      %v749 = vadd.f32 %v747, %v748
      %s750 = vtos %v749
      %s751 = scalar_lea.smem [#allocation12], 16
      %752 = sst [smem:[%s751]] %s750
      %v753 = vld [vmem:[%s465] sm:$0x1]
      %v754 = vsel %vm532, %v753, 0.0
      %755 = vadd.xlane.f32.xlu0 %v754
      %v756 = vpop.xlane.xlu0 %755
      %v757 = vrot.slane %v756, 4
      %v758 = vadd.f32 %v756, %v757
      %v759 = vrot.slane %v758, 2
      %v760 = vadd.f32 %v758, %v759
      %v761 = vrot.slane %v760, 1
      %v762 = vadd.f32 %v760, %v761
      %s763 = vtos %v762
      %s764 = scalar_lea.smem [#allocation12], 17
      %765 = sst [smem:[%s764]] %s763
      %v766 = vld [vmem:[%s477] sm:$0x1]
      %v767 = vsel %vm532, %v766, 0.0
      %768 = vadd.xlane.f32.xlu0 %v767
      %v769 = vpop.xlane.xlu0 %768
      %v770 = vrot.slane %v769, 4
      %v771 = vadd.f32 %v769, %v770
      %v772 = vrot.slane %v771, 2
      %v773 = vadd.f32 %v771, %v772
      %v774 = vrot.slane %v773, 1
      %v775 = vadd.f32 %v773, %v774
      %s776 = vtos %v775
      %s777 = scalar_lea.smem [#allocation12], 18
      %778 = sst [smem:[%s777]] %s776
      %v779 = vld [vmem:[%s491] sm:$0x1]
      %v780 = vsel %vm532, %v779, 0.0
      %781 = vadd.xlane.f32.xlu0 %v780
      %v782 = vpop.xlane.xlu0 %781
      %v783 = vrot.slane %v782, 4
      %v784 = vadd.f32 %v782, %v783
      %v785 = vrot.slane %v784, 2
      %v786 = vadd.f32 %v784, %v785
      %v787 = vrot.slane %v786, 1
      %v788 = vadd.f32 %v786, %v787
      %s789 = vtos %v788
      %s790 = scalar_lea.smem [#allocation12], 19
      %791 = sst [smem:[%s790]] %s789
      %v792 = vld [vmem:[%s505] sm:$0x1]
      %v793 = vsel %vm532, %v792, 0.0
      %794 = vadd.xlane.f32.xlu0 %v793
      %v795 = vpop.xlane.xlu0 %794
      %v796 = vrot.slane %v795, 4
      %v797 = vadd.f32 %v795, %v796
      %v798 = vrot.slane %v797, 2
      %v799 = vadd.f32 %v797, %v798
      %v800 = vrot.slane %v799, 1
      %v801 = vadd.f32 %v799, %v800
      %s802 = vtos %v801
      %s803 = scalar_lea.smem [#allocation12], 20
      %804 = sst [smem:[%s803]] %s802
      %v805 = vld [vmem:[%s517] sm:$0x1]
      %v806 = vsel %vm532, %v805, 0.0
      %807 = vadd.xlane.f32.xlu0 %v806
      %v808 = vpop.xlane.xlu0 %807
      %v809 = vrot.slane %v808, 4
      %v810 = vadd.f32 %v808, %v809
      %v811 = vrot.slane %v810, 2
      %v812 = vadd.f32 %v810, %v811
      %v813 = vrot.slane %v812, 1
      %v814 = vadd.f32 %v812, %v813
      %s815 = vtos %v814
      %s816 = scalar_lea.smem [#allocation12], 21
      %817 = sst [smem:[%s816]] %s815
    $region61: #{tpu_custom_call.1} parent=1 // pred_fallthru
      _
    // Predicated region
    $region62: #{tpu_custom_call.1} parent=1 // pred_check
      _
    $region63: #{tpu_custom_call.1} parent=1 // pred_check_branch
      %819 = sbr.rel (0) target = $region65
    $region64: #{tpu_custom_call.1} parent=1 // pred_region
      %s821 = ssub.s32 16, 16
      %822 = vsyncadd [#allocation5], %s821
      %825 = dma.smem_to_hbm [#allocation12], 16, %s8, [#allocation5]
    $region65: #{tpu_custom_call.1} parent=1 // pred_fallthru
      _
    // Predicated region
    $region66: #{tpu_custom_call.1} parent=1 // pred_check
      _
    $region67: #{tpu_custom_call.1} parent=1 // pred_check_branch
      %827 = sbr.rel (0) target = $region69
    $region68: #{tpu_custom_call.1} parent=1 // pred_region
      %828 = dma.done [#allocation5], 16
    $region69: #{tpu_custom_call.1} parent=1 // pred_fallthru
      _
    %829 = sfence
    %830 = vsyncpa [#allocation4], 1
    %831 = vsyncpa [#allocation7], 1
    %832 = vsyncpa [#allocation10], 1
    %833 = vsyncpa [#allocation5], 1

</llo_original>
